<compile_context>
chip_gen: v7x
topology: tpu7x:2x2x1
jax: 0.10.0
libtpu: 0.0.40
codegen_flags: <defaults>
</compile_context>

<pallas_src>
import functools

import jax
import jax.numpy as jnp
from jax import lax
from jax.experimental import pallas as pl
from jax.experimental.pallas import tpu as pltpu


def _dsconv_kernel(x_ref, w1t_ref, b1_ref, wd_ref, bd_ref, w2t_ref, b2_ref,
                   o_ref, ypad_ref, *,
                   H, W, Cin, Cm, Cout, k, stride, padding, dilation, Ho, Wo):
    # x_ref   : (1, H, W, Cin)   one batch element, channels-last
    # w1t_ref : (Cin, Cm)        PWC1 weight, transposed (so y = x @ w1t)
    # b1_ref  : (1, Cm)
    # wd_ref  : (k*k, Cm)        depthwise taps, row t = (dy, dx) = divmod(t, k)
    # bd_ref  : (1, Cm)
    # w2t_ref : (Cm, Cout)       PWC2 weight, transposed
    # b2_ref  : (1, Cout)
    # o_ref   : (1, Ho, Wo, Cout)
    # ypad_ref: VMEM scratch (H+2p, W+2p, Cm) f32 -- zero-padded PWC1 output

    # ---- PWC1: 1x1 conv == one lane-dense MXU matmul over all pixels -------
    x = x_ref[0].reshape(H * W, Cin).astype(jnp.float32)
    y = jnp.dot(x, w1t_ref[...], preferred_element_type=jnp.float32)
    y = y + b1_ref[...]                                   # (H*W, Cm)
    y = y.reshape(H, W, Cm)

    # ---- zero-pad the PWC1 output into VMEM scratch (nn.Conv2d padding) ----
    p = padding
    if p > 0:
        ypad_ref[...] = jnp.zeros(ypad_ref.shape, ypad_ref.dtype)
    ypad_ref[pl.ds(p, H), pl.ds(p, W), :] = y

    # ---- DWC: depthwise k x k conv as k*k shifted-window VPU taps ----------
    wd = wd_ref[...].astype(jnp.float32)                  # (k*k, Cm)
    th = (Ho - 1) * stride + 1                            # dense window height
    tw = (Wo - 1) * stride + 1                            # dense window width
    acc = jnp.zeros((Ho, Wo, Cm), jnp.float32)
    for t in range(k * k):                                # static unroll (k*k small)
        dy, dx = divmod(t, k)
        tap = ypad_ref[pl.ds(dy * dilation, th), pl.ds(dx * dilation, tw), :]
        if stride > 1:
            tap = lax.slice(tap, (0, 0, 0), (th, tw, Cm),
                            strides=(stride, stride, 1))
        acc = acc + tap * wd[t][None, None, :]            # per-channel weight on lanes
    z = acc + bd_ref[...].reshape(1, 1, Cm)
    z = z.reshape(Ho * Wo, Cm)

    # ---- PWC2: second 1x1 conv as one MXU matmul ---------------------------
    out = jnp.dot(z, w2t_ref[...], preferred_element_type=jnp.float32)
    out = out + b2_ref[...]
    o_ref[0] = out.reshape(Ho, Wo, Cout).astype(o_ref.dtype)


def dsconv(x, w1, b1, wdw, bdw, w2, b2, *, stride=1, padding=0, dilation=1):
    """DSConv forward.

    x   : (B, Cin, H, W)  NCHW, like PyTorch
    w1  : (Cm, Cin, 1, 1),  b1 : (Cm,)    -- PWC1 (module requires Cm == Cin)
    wdw : (Cm, 1, k, k),    bdw: (Cm,)    -- depthwise conv
    w2  : (Cout, Cm, 1, 1), b2 : (Cout,)  -- PWC2
    returns (B, Cout, Ho, Wo)
    """
    B, Cin, H, W = x.shape
    Cm = w1.shape[0]
    Cout = w2.shape[0]
    k = wdw.shape[-1]
    assert w1.shape == (Cm, Cin, 1, 1)
    assert wdw.shape == (Cm, 1, k, k)
    assert w2.shape == (Cout, Cm, 1, 1)

    Ho = (H + 2 * padding - dilation * (k - 1) - 1) // stride + 1
    Wo = (W + 2 * padding - dilation * (k - 1) - 1) // stride + 1
    Hp, Wp = H + 2 * padding, W + 2 * padding

    # NCHW -> NHWC so channels land on the lane (last) axis inside the kernel.
    x_nhwc = jnp.transpose(x, (0, 2, 3, 1))

    w1t = jnp.transpose(w1[:, :, 0, 0], (1, 0))                    # (Cin, Cm)
    w2t = jnp.transpose(w2[:, :, 0, 0], (1, 0))                    # (Cm, Cout)
    wd_taps = jnp.transpose(wdw[:, 0], (1, 2, 0)).reshape(k * k, Cm)
    b1r = b1.reshape(1, Cm)
    bdr = bdw.reshape(1, Cm)
    b2r = b2.reshape(1, Cout)

    kernel = functools.partial(
        _dsconv_kernel, H=H, W=W, Cin=Cin, Cm=Cm, Cout=Cout, k=k,
        stride=stride, padding=padding, dilation=dilation, Ho=Ho, Wo=Wo)

    flops = 2 * B * (H * W * Cin * Cm + Ho * Wo * Cm * k * k + Ho * Wo * Cm * Cout)
    bytes_accessed = 4 * (B * H * W * Cin + B * Ho * Wo * Cout
                          + Cin * Cm + Cm * Cout + k * k * Cm + 2 * Cm + Cout)

    out_nhwc = pl.pallas_call(
        kernel,
        out_shape=jax.ShapeDtypeStruct((B, Ho, Wo, Cout), x.dtype),
        grid_spec=pltpu.PrefetchScalarGridSpec(
            num_scalar_prefetch=0,
            grid=(B,),
            in_specs=[
                pl.BlockSpec((1, H, W, Cin), lambda b: (b, 0, 0, 0)),
                pl.BlockSpec((Cin, Cm), lambda b: (0, 0)),
                pl.BlockSpec((1, Cm), lambda b: (0, 0)),
                pl.BlockSpec((k * k, Cm), lambda b: (0, 0)),
                pl.BlockSpec((1, Cm), lambda b: (0, 0)),
                pl.BlockSpec((Cm, Cout), lambda b: (0, 0)),
                pl.BlockSpec((1, Cout), lambda b: (0, 0)),
            ],
            out_specs=pl.BlockSpec((1, Ho, Wo, Cout), lambda b: (b, 0, 0, 0)),
            scratch_shapes=[pltpu.VMEM((Hp, Wp, Cm), jnp.float32)],
        ),
        compiler_params=pltpu.CompilerParams(
            dimension_semantics=("parallel",),
        ),
        cost_estimate=pl.CostEstimate(
            flops=flops, transcendentals=0, bytes_accessed=bytes_accessed),
    )(x_nhwc, w1t, b1r, wd_taps, bdr, w2t, b2r)

    return jnp.transpose(out_nhwc, (0, 3, 1, 2))


def _reference(x, w1, b1, wdw, bdw, w2, b2, *, stride, padding, dilation):
    """Pure-JAX mirror of the PyTorch DSConv module (NCHW convs)."""
    dn = ("NCHW", "OIHW", "NCHW")
    y = lax.conv_general_dilated(x, w1, window_strides=(1, 1), padding="VALID",
                                 dimension_numbers=dn)
    y = y + b1[None, :, None, None]
    z = lax.conv_general_dilated(
        y, wdw, window_strides=(stride, stride),
        padding=[(padding, padding), (padding, padding)],
        rhs_dilation=(dilation, dilation),
        dimension_numbers=dn, feature_group_count=wdw.shape[0])
    z = z + bdw[None, :, None, None]
    out = lax.conv_general_dilated(z, w2, window_strides=(1, 1), padding="VALID",
                                   dimension_numbers=dn)
    return out + b2[None, :, None, None]


if __name__ == "__main__":
    key = jax.random.PRNGKey(0)
    ks = jax.random.split(key, 7)

    # Small test shapes; DSConv requires PWC1 out_channels == in_channels.
    B, C, H, W = 2, 128, 16, 16
    ksz, stride, padding, dilation = 3, 1, 1, 1

    # Snap test data to the bf16 grid so the MXU's bf16 passes on f32 matmuls
    # introduce minimal divergence between the Pallas kernel and the XLA
    # reference convolutions.
    def q(a):
        return a.astype(jnp.bfloat16).astype(jnp.float32)

    x = q(jax.random.normal(ks[0], (B, C, H, W), dtype=jnp.float32))
    w1 = q(jax.random.normal(ks[1], (C, C, 1, 1), dtype=jnp.float32) * 0.1)
    b1 = q(jax.random.normal(ks[2], (C,), dtype=jnp.float32) * 0.5)
    wd = q(jax.random.normal(ks[3], (C, 1, ksz, ksz), dtype=jnp.float32) * 0.3)
    bd = q(jax.random.normal(ks[4], (C,), dtype=jnp.float32) * 0.5)
    w2 = q(jax.random.normal(ks[5], (C, C, 1, 1), dtype=jnp.float32) * 0.1)
    b2 = q(jax.random.normal(ks[6], (C,), dtype=jnp.float32) * 0.5)

    out = dsconv(x, w1, b1, wd, bd, w2, b2,
                 stride=stride, padding=padding, dilation=dilation)
    out = jax.block_until_ready(out)

    ref = _reference(x, w1, b1, wd, bd, w2, b2,
                     stride=stride, padding=padding, dilation=dilation)
    ref = jax.block_until_ready(ref)

    assert out.shape == ref.shape == (B, C, H, W)
    # Tolerance sized for MXU bf16-pass rounding differences between the
    # Mosaic kernel and the XLA reference convs; structural bugs are O(1).
    rel_err = float(jnp.max(jnp.abs(out - ref)) / jnp.max(jnp.abs(ref)))
    assert jnp.all(jnp.isfinite(out)), "non-finite output"
    assert rel_err < 1e-2, f"relative error too large: {rel_err}"

    print("KERNEL_OK")
</pallas_src>

<mosaic_0001>
module attributes {stable_mosaic.version = 11 : i64} {
  func.func @_dsconv_kernel(%arg0: i32, %arg1: memref<1x16x16x128xf32, #tpu.memory_space<vmem>>, %arg2: memref<128x128xf32, #tpu.memory_space<vmem>>, %arg3: memref<1x128xf32, #tpu.memory_space<vmem>>, %arg4: memref<9x128xf32, #tpu.memory_space<vmem>>, %arg5: memref<1x128xf32, #tpu.memory_space<vmem>>, %arg6: memref<128x128xf32, #tpu.memory_space<vmem>>, %arg7: memref<1x128xf32, #tpu.memory_space<vmem>>, %arg8: memref<1x16x16x128xf32, #tpu.memory_space<vmem>>, %arg9: memref<18x18x128xf32, #tpu.memory_space<vmem>>) attributes {dimension_semantics = [#tpu.dimension_semantics<parallel>], iteration_bounds = array<i64: 2>, scalar_prefetch = 0 : i64, scratch_operands = 1 : i64, tpu.core_type = #tpu.core_type<tc>, window_params = [{transform_indices = @transform_0, window_bounds = array<i64: 1, 16, 16, 128>}, {pipeline_mode = #tpu.pipeline_mode<synchronous>, transform_indices = @transform_1, window_bounds = array<i64: 128, 128>}, {pipeline_mode = #tpu.pipeline_mode<synchronous>, transform_indices = @transform_2, window_bounds = array<i64: 1, 128>}, {pipeline_mode = #tpu.pipeline_mode<synchronous>, transform_indices = @transform_3, window_bounds = array<i64: 9, 128>}, {pipeline_mode = #tpu.pipeline_mode<synchronous>, transform_indices = @transform_4, window_bounds = array<i64: 1, 128>}, {pipeline_mode = #tpu.pipeline_mode<synchronous>, transform_indices = @transform_5, window_bounds = array<i64: 128, 128>}, {pipeline_mode = #tpu.pipeline_mode<synchronous>, transform_indices = @transform_6, window_bounds = array<i64: 1, 128>}, {transform_indices = @transform_7, window_bounds = array<i64: 1, 16, 16, 128>}]} {
    %c0 = arith.constant 0 : index
    %c0_0 = arith.constant 0 : index
    %c0_1 = arith.constant 0 : index
    %c0_2 = arith.constant 0 : index
    %0 = vector.load %arg1[%c0, %c0_0, %c0_1, %c0_2] : memref<1x16x16x128xf32, #tpu.memory_space<vmem>>, vector<1x16x16x128xf32>
    %1 = vector.shape_cast %0 : vector<1x16x16x128xf32> to vector<16x16x128xf32>
    %2 = vector.shape_cast %1 : vector<16x16x128xf32> to vector<256x128xf32>
    %c0_3 = arith.constant 0 : index
    %c0_4 = arith.constant 0 : index
    %3 = vector.load %arg2[%c0_3, %c0_4] : memref<128x128xf32, #tpu.memory_space<vmem>>, vector<128x128xf32>
    %cst = arith.constant dense<0.000000e+00> : vector<256x128xf32>
    %4 = tpu.matmul %2, %3, %cst {dimension_numbers = #tpu.dot_dimension_numbers<[1], [0], [0], [1], [0, 0, 1, 1], [], []>} : vector<256x128xf32>, vector<128x128xf32>, vector<256x128xf32> -> vector<256x128xf32>
    %c0_5 = arith.constant 0 : index
    %c0_6 = arith.constant 0 : index
    %5 = vector.load %arg3[%c0_5, %c0_6] : memref<1x128xf32, #tpu.memory_space<vmem>>, vector<1x128xf32>
    %6 = vector.broadcast %5 : vector<1x128xf32> to vector<256x128xf32>
    %7 = arith.addf %4, %6 : vector<256x128xf32>
    %8 = vector.shape_cast %7 : vector<256x128xf32> to vector<16x16x128xf32>
    %cst_7 = arith.constant 0.000000e+00 : f32
    %9 = vector.broadcast %cst_7 : f32 to vector<18x18x128xf32>
    %c0_8 = arith.constant 0 : index
    %c0_9 = arith.constant 0 : index
    %c0_10 = arith.constant 0 : index
    %10 = vector.load %arg9[%c0_8, %c0_9, %c0_10] : memref<18x18x128xf32, #tpu.memory_space<vmem>>, vector<18x18x128xf32>
    tpu.vector_store %arg9[%c0_8, %c0_9, %c0_10], %9 {strides = array<i32>} : memref<18x18x128xf32, #tpu.memory_space<vmem>>, vector<18x18x128xf32>,
    %c1 = arith.constant 1 : index
    %c1_11 = arith.constant 1 : index
    %c0_12 = arith.constant 0 : index
    %11 = vector.load %arg9[%c1, %c1_11, %c0_12] : memref<18x18x128xf32, #tpu.memory_space<vmem>>, vector<16x16x128xf32>
    tpu.vector_store %arg9[%c1, %c1_11, %c0_12], %8 {strides = array<i32>} : memref<18x18x128xf32, #tpu.memory_space<vmem>>, vector<16x16x128xf32>,
    %c0_13 = arith.constant 0 : index
    %c0_14 = arith.constant 0 : index
    %12 = vector.load %arg4[%c0_13, %c0_14] : memref<9x128xf32, #tpu.memory_space<vmem>>, vector<9x128xf32>
    %cst_15 = arith.constant 0.000000e+00 : f32
    %13 = vector.broadcast %cst_15 : f32 to vector<16x16x128xf32>
    %c0_16 = arith.constant 0 : index
    %c0_17 = arith.constant 0 : index
    %c0_18 = arith.constant 0 : index
    %14 = vector.load %arg9[%c0_16, %c0_17, %c0_18] : memref<18x18x128xf32, #tpu.memory_space<vmem>>, vector<16x16x128xf32>
    %15 = vector.extract_strided_slice %12 {offsets = [0, 0], sizes = [1, 128], strides = [1, 1]} : vector<9x128xf32> to vector<1x128xf32>
    %16 = vector.shape_cast %15 : vector<1x128xf32> to vector<128xf32>
    %17 = vector.shape_cast %16 : vector<128xf32> to vector<1x1x128xf32>
    %18 = vector.broadcast %17 : vector<1x1x128xf32> to vector<16x16x128xf32>
    %19 = arith.mulf %14, %18 : vector<16x16x128xf32>
    %20 = arith.addf %13, %19 : vector<16x16x128xf32>
    %c0_19 = arith.constant 0 : index
    %c1_20 = arith.constant 1 : index
    %c0_21 = arith.constant 0 : index
    %21 = vector.load %arg9[%c0_19, %c1_20, %c0_21] : memref<18x18x128xf32, #tpu.memory_space<vmem>>, vector<16x16x128xf32>
    %22 = vector.extract_strided_slice %12 {offsets = [1, 0], sizes = [1, 128], strides = [1, 1]} : vector<9x128xf32> to vector<1x128xf32>
    %23 = vector.shape_cast %22 : vector<1x128xf32> to vector<128xf32>
    %24 = vector.shape_cast %23 : vector<128xf32> to vector<1x1x128xf32>
    %25 = vector.broadcast %24 : vector<1x1x128xf32> to vector<16x16x128xf32>
    %26 = arith.mulf %21, %25 : vector<16x16x128xf32>
    %27 = arith.addf %20, %26 : vector<16x16x128xf32>
    %c0_22 = arith.constant 0 : index
    %c2 = arith.constant 2 : index
    %c0_23 = arith.constant 0 : index
    %28 = vector.load %arg9[%c0_22, %c2, %c0_23] : memref<18x18x128xf32, #tpu.memory_space<vmem>>, vector<16x16x128xf32>
    %29 = vector.extract_strided_slice %12 {offsets = [2, 0], sizes = [1, 128], strides = [1, 1]} : vector<9x128xf32> to vector<1x128xf32>
    %30 = vector.shape_cast %29 : vector<1x128xf32> to vector<128xf32>
    %31 = vector.shape_cast %30 : vector<128xf32> to vector<1x1x128xf32>
    %32 = vector.broadcast %31 : vector<1x1x128xf32> to vector<16x16x128xf32>
    %33 = arith.mulf %28, %32 : vector<16x16x128xf32>
    %34 = arith.addf %27, %33 : vector<16x16x128xf32>
    %c1_24 = arith.constant 1 : index
    %c0_25 = arith.constant 0 : index
    %c0_26 = arith.constant 0 : index
    %35 = vector.load %arg9[%c1_24, %c0_25, %c0_26] : memref<18x18x128xf32, #tpu.memory_space<vmem>>, vector<16x16x128xf32>
    %36 = vector.extract_strided_slice %12 {offsets = [3, 0], sizes = [1, 128], strides = [1, 1]} : vector<9x128xf32> to vector<1x128xf32>
    %37 = vector.shape_cast %36 : vector<1x128xf32> to vector<128xf32>
    %38 = vector.shape_cast %37 : vector<128xf32> to vector<1x1x128xf32>
    %39 = vector.broadcast %38 : vector<1x1x128xf32> to vector<16x16x128xf32>
    %40 = arith.mulf %35, %39 : vector<16x16x128xf32>
    %41 = arith.addf %34, %40 : vector<16x16x128xf32>
    %c1_27 = arith.constant 1 : index
    %c1_28 = arith.constant 1 : index
    %c0_29 = arith.constant 0 : index
    %42 = vector.load %arg9[%c1_27, %c1_28, %c0_29] : memref<18x18x128xf32, #tpu.memory_space<vmem>>, vector<16x16x128xf32>
    %43 = vector.extract_strided_slice %12 {offsets = [4, 0], sizes = [1, 128], strides = [1, 1]} : vector<9x128xf32> to vector<1x128xf32>
    %44 = vector.shape_cast %43 : vector<1x128xf32> to vector<128xf32>
    %45 = vector.shape_cast %44 : vector<128xf32> to vector<1x1x128xf32>
    %46 = vector.broadcast %45 : vector<1x1x128xf32> to vector<16x16x128xf32>
    %47 = arith.mulf %42, %46 : vector<16x16x128xf32>
    %48 = arith.addf %41, %47 : vector<16x16x128xf32>
    %c1_30 = arith.constant 1 : index
    %c2_31 = arith.constant 2 : index
    %c0_32 = arith.constant 0 : index
    %49 = vector.load %arg9[%c1_30, %c2_31, %c0_32] : memref<18x18x128xf32, #tpu.memory_space<vmem>>, vector<16x16x128xf32>
    %50 = vector.extract_strided_slice %12 {offsets = [5, 0], sizes = [1, 128], strides = [1, 1]} : vector<9x128xf32> to vector<1x128xf32>
    %51 = vector.shape_cast %50 : vector<1x128xf32> to vector<128xf32>
    %52 = vector.shape_cast %51 : vector<128xf32> to vector<1x1x128xf32>
    %53 = vector.broadcast %52 : vector<1x1x128xf32> to vector<16x16x128xf32>
    %54 = arith.mulf %49, %53 : vector<16x16x128xf32>
    %55 = arith.addf %48, %54 : vector<16x16x128xf32>
    %c2_33 = arith.constant 2 : index
    %c0_34 = arith.constant 0 : index
    %c0_35 = arith.constant 0 : index
    %56 = vector.load %arg9[%c2_33, %c0_34, %c0_35] : memref<18x18x128xf32, #tpu.memory_space<vmem>>, vector<16x16x128xf32>
    %57 = vector.extract_strided_slice %12 {offsets = [6, 0], sizes = [1, 128], strides = [1, 1]} : vector<9x128xf32> to vector<1x128xf32>
    %58 = vector.shape_cast %57 : vector<1x128xf32> to vector<128xf32>
    %59 = vector.shape_cast %58 : vector<128xf32> to vector<1x1x128xf32>
    %60 = vector.broadcast %59 : vector<1x1x128xf32> to vector<16x16x128xf32>
    %61 = arith.mulf %56, %60 : vector<16x16x128xf32>
    %62 = arith.addf %55, %61 : vector<16x16x128xf32>
    %c2_36 = arith.constant 2 : index
    %c1_37 = arith.constant 1 : index
    %c0_38 = arith.constant 0 : index
    %63 = vector.load %arg9[%c2_36, %c1_37, %c0_38] : memref<18x18x128xf32, #tpu.memory_space<vmem>>, vector<16x16x128xf32>
    %64 = vector.extract_strided_slice %12 {offsets = [7, 0], sizes = [1, 128], strides = [1, 1]} : vector<9x128xf32> to vector<1x128xf32>
    %65 = vector.shape_cast %64 : vector<1x128xf32> to vector<128xf32>
    %66 = vector.shape_cast %65 : vector<128xf32> to vector<1x1x128xf32>
    %67 = vector.broadcast %66 : vector<1x1x128xf32> to vector<16x16x128xf32>
    %68 = arith.mulf %63, %67 : vector<16x16x128xf32>
    %69 = arith.addf %62, %68 : vector<16x16x128xf32>
    %c2_39 = arith.constant 2 : index
    %c2_40 = arith.constant 2 : index
    %c0_41 = arith.constant 0 : index
    %70 = vector.load %arg9[%c2_39, %c2_40, %c0_41] : memref<18x18x128xf32, #tpu.memory_space<vmem>>, vector<16x16x128xf32>
    %71 = vector.extract_strided_slice %12 {offsets = [8, 0], sizes = [1, 128], strides = [1, 1]} : vector<9x128xf32> to vector<1x128xf32>
    %72 = vector.shape_cast %71 : vector<1x128xf32> to vector<128xf32>
    %73 = vector.shape_cast %72 : vector<128xf32> to vector<1x1x128xf32>
    %74 = vector.broadcast %73 : vector<1x1x128xf32> to vector<16x16x128xf32>
    %75 = arith.mulf %70, %74 : vector<16x16x128xf32>
    %76 = arith.addf %69, %75 : vector<16x16x128xf32>
    %c0_42 = arith.constant 0 : index
    %c0_43 = arith.constant 0 : index
    %77 = vector.load %arg5[%c0_42, %c0_43] : memref<1x128xf32, #tpu.memory_space<vmem>>, vector<1x128xf32>
    %78 = vector.shape_cast %77 : vector<1x128xf32> to vector<1x1x128xf32>
    %79 = vector.broadcast %78 : vector<1x1x128xf32> to vector<16x16x128xf32>
    %80 = arith.addf %76, %79 : vector<16x16x128xf32>
    %81 = vector.shape_cast %80 : vector<16x16x128xf32> to vector<256x128xf32>
    %c0_44 = arith.constant 0 : index
    %c0_45 = arith.constant 0 : index
    %82 = vector.load %arg6[%c0_44, %c0_45] : memref<128x128xf32, #tpu.memory_space<vmem>>, vector<128x128xf32>
    %cst_46 = arith.constant dense<0.000000e+00> : vector<256x128xf32>
    %83 = tpu.matmul %81, %82, %cst_46 {dimension_numbers = #tpu.dot_dimension_numbers<[1], [0], [0], [1], [0, 0, 1, 1], [], []>} : vector<256x128xf32>, vector<128x128xf32>, vector<256x128xf32> -> vector<256x128xf32>
    %c0_47 = arith.constant 0 : index
    %c0_48 = arith.constant 0 : index
    %84 = vector.load %arg7[%c0_47, %c0_48] : memref<1x128xf32, #tpu.memory_space<vmem>>, vector<1x128xf32>
    %85 = vector.broadcast %84 : vector<1x128xf32> to vector<256x128xf32>
    %86 = arith.addf %83, %85 : vector<256x128xf32>
    %87 = vector.shape_cast %86 : vector<256x128xf32> to vector<16x16x128xf32>
    %c0_49 = arith.constant 0 : index
    %c0_50 = arith.constant 0 : index
    %c0_51 = arith.constant 0 : index
    %c0_52 = arith.constant 0 : index
    %88 = vector.load %arg8[%c0_49, %c0_50, %c0_51, %c0_52] : memref<1x16x16x128xf32, #tpu.memory_space<vmem>>, vector<1x16x16x128xf32>
    %89 = vector.shape_cast %88 : vector<1x16x16x128xf32> to vector<16x16x128xf32>
    %90 = vector.shape_cast %87 : vector<16x16x128xf32> to vector<1x16x16x128xf32>
    tpu.vector_store %arg8[%c0_49, %c0_50, %c0_51, %c0_52], %90 {strides = array<i32>} : memref<1x16x16x128xf32, #tpu.memory_space<vmem>>, vector<1x16x16x128xf32>,
    return
  }
  func.func @transform_0(%arg0: i32) -> (i32, i32, i32, i32) {
    %c0_i32 = arith.constant 0 : i32
    %c0_i32_0 = arith.constant 0 : i32
    %c0_i32_1 = arith.constant 0 : i32
    %c0_i32_2 = arith.constant 0 : i32
    return %arg0, %c0_i32, %c0_i32_0, %c0_i32_1 : i32, i32, i32, i32
  }
  func.func @transform_1(%arg0: i32) -> (i32, i32) {
    %c0_i32 = arith.constant 0 : i32
    %c0_i32_0 = arith.constant 0 : i32
    %c0_i32_1 = arith.constant 0 : i32
    return %c0_i32, %c0_i32_0 : i32, i32
  }
  func.func @transform_2(%arg0: i32) -> (i32, i32) {
    %c0_i32 = arith.constant 0 : i32
    %c0_i32_0 = arith.constant 0 : i32
    %c0_i32_1 = arith.constant 0 : i32
    return %c0_i32, %c0_i32_0 : i32, i32
  }
  func.func @transform_3(%arg0: i32) -> (i32, i32) {
    %c0_i32 = arith.constant 0 : i32
    %c0_i32_0 = arith.constant 0 : i32
    %c0_i32_1 = arith.constant 0 : i32
    return %c0_i32, %c0_i32_0 : i32, i32
  }
  func.func @transform_4(%arg0: i32) -> (i32, i32) {
    %c0_i32 = arith.constant 0 : i32
    %c0_i32_0 = arith.constant 0 : i32
    %c0_i32_1 = arith.constant 0 : i32
    return %c0_i32, %c0_i32_0 : i32, i32
  }
  func.func @transform_5(%arg0: i32) -> (i32, i32) {
    %c0_i32 = arith.constant 0 : i32
    %c0_i32_0 = arith.constant 0 : i32
    %c0_i32_1 = arith.constant 0 : i32
    return %c0_i32, %c0_i32_0 : i32, i32
  }
  func.func @transform_6(%arg0: i32) -> (i32, i32) {
    %c0_i32 = arith.constant 0 : i32
    %c0_i32_0 = arith.constant 0 : i32
    %c0_i32_1 = arith.constant 0 : i32
    return %c0_i32, %c0_i32_0 : i32, i32
  }
  func.func @transform_7(%arg0: i32) -> (i32, i32, i32, i32) {
    %c0_i32 = arith.constant 0 : i32
    %c0_i32_0 = arith.constant 0 : i32
    %c0_i32_1 = arith.constant 0 : i32
    %c0_i32_2 = arith.constant 0 : i32
    return %arg0, %c0_i32, %c0_i32_0, %c0_i32_1 : i32, i32, i32, i32
  }
}

</mosaic_0001>

<llo_original>
// kernel: tpu_custom_call.1
$region0: #{tpu_custom_call.1}
  #allocation0 [shape = 'u32[]', space=smem, size = 0x4, offset = 0x4, fixed_abs, tag = 'smem constant byte address 0x4 - core index']
  #allocation1 [shape = 'u32[144,128]{1,0:T(1,128)}', space=vmem, size = 0x12000, scoped, tag = 'internal scratch']
  #allocation2 [shape = 'f32[18,18,128]{2,1,0:T(8,128)}', space=vmem, size = 0x36000, scoped, tag = 'scratch operand']
  %s0 = inlined_call_operand.hbm [shape: f32[2,16,16,128], index: 0, kind: input, shape index: {}]
  %s1 = inlined_call_operand.hbm [shape: f32[128,128], index: 1, kind: input, shape index: {}]
  %s2 = inlined_call_operand.vmem [shape: f32[1,128], index: 2, kind: input, shape index: {}]
  %s3 = inlined_call_operand.hbm [shape: f32[9,128], index: 3, kind: input, shape index: {}]
  %s4 = inlined_call_operand.vmem [shape: f32[1,128], index: 4, kind: input, shape index: {}]
  %s5 = inlined_call_operand.hbm [shape: f32[128,128], index: 5, kind: input, shape index: {}]
  %s6 = inlined_call_operand.vmem [shape: f32[1,128], index: 6, kind: input, shape index: {}]
  %s7 = inlined_call_operand.hbm [shape: f32[2,16,16,128], index: 7, kind: output, shape index: {}]
  %s8 = sld [smem:[#allocation0]]
  $region77: #{tpu_custom_call.1} parent=0
    _
  %s10 = ssub.s32 1, %s8
  %s11 = scalar_select 0, %s10, %s8
  $region1: #{tpu_custom_call.1} parent=0
    #allocation3 [shape = 'u8[262144]{0}', space=vmem, size = 0x40000, scoped, tag = 'input window, operand 0']
    #allocation4 [shape = 's32[2]{0}', space=sflag, size = 0x8, scoped, tag = 'scoped memory for tpu_custom_call.1']
    #allocation5 [shape = 's32[2]{0}', space=sflag, size = 0x8, scoped, tag = 'scoped memory for tpu_custom_call.1']
    #allocation6 [shape = 'u8[65536]{0}', space=vmem, size = 0x10000, scoped, tag = 'input window, operand 1, single buffered']
    #allocation7 [shape = 's32[1]{0}', space=sflag, size = 0x4, scoped, tag = 'scoped memory for tpu_custom_call.1']
    #allocation8 [shape = 'u8[8192]{0}', space=vmem, size = 0x2000, scoped, tag = 'input window, operand 3, single buffered']
    #allocation9 [shape = 'u8[65536]{0}', space=vmem, size = 0x10000, scoped, tag = 'input window, operand 5, single buffered']
    #allocation10 [shape = 's32[1]{0}', space=sflag, size = 0x4, scoped, tag = 'scoped memory for tpu_custom_call.1']
    #allocation11 [shape = 'u8[262144]{0}', space=vmem, size = 0x40000, scoped, tag = 'output window, operand 0']
    %12 = vsyncpa [#allocation4], 0
    %s13 = scalar_lea.sflag [#allocation4], 1
    %14 = vsyncpa %s13, 0
    %15 = vsyncpa [#allocation7], 0
    %16 = vsyncpa [#allocation10], 0
    %17 = vsyncpa [#allocation5], 0
    %s18 = scalar_lea.sflag [#allocation5], 1
    %19 = vsyncpa %s18, 0
    loop: start=0, step=1, limit=4
    $region2: #{tpu_custom_call.1} parent=1 // loop_pre_header
      _
    $region3: #{tpu_custom_call.1} parent=1 // loop_header
      %s21 = sphi 0, %s25
      %p22 = scmp.ge.s32.totalorder %s21, 4
      %s31 = sphi 0, %s33
      %s34 = sphi 0, %s31
      %s35 = sphi 0, %s34
      %s51 = sphi 0, %s35
      %s55 = sphi 0, %s55
      %s57 = sphi 0, %s55
      %s58 = sphi 0, %s57
      %s72 = sphi 0, %s58
      %s76 = sphi 0, %s76
      %s78 = sphi 0, %s76
      %s79 = sphi 0, %s78
      %s93 = sphi 0, %s79
      %s97 = sphi 0, %s97
      %s99 = sphi 0, %s97
      %s100 = sphi 0, %s99
      %s114 = sphi 0, %s100
      %s118 = sphi 0, %s118
      %s120 = sphi 0, %s118
      %s121 = sphi 0, %s120
      %s135 = sphi 0, %s121
      %s139 = sphi 0, %s139
      %s141 = sphi 0, %s139
      %s142 = sphi 0, %s141
      %s156 = sphi 0, %s142
      %s160 = sphi 0, %s160
      %s162 = sphi 0, %s160
      %s163 = sphi 0, %s162
      %s177 = sphi 0, %s163
      %s183 = sphi 0, %s185
      %s186 = sphi 0, %s183
      %s187 = sphi 0, %s186
      %s203 = sphi 0, %s187
    $region4: #{tpu_custom_call.1} parent=1 // loop_header_branch
      %24 = sbr.rel (%p22) target = $region8
    $region5: #{tpu_custom_call.1} parent=1 // loop_body
      %s26 = ssub.s32 %s21, 1
      %s27 = ssub.s32 %s21, 2
      %s28 = sadd.s32 %s21, 1
      %s29 = ssub.s32 %s21, %s28
      %p30 = scmp.eq.s32.totalorder %s29, 0
      %s32 = sadd.s32 %s31, 1
      %s33 = scalar_select %p30, %s31, %s32
      %p36 = pneg %p30
      %p37 = scmp.eq.s32.totalorder %s21, 1
      %p38 = por %p36, %p37
      %p39 = scmp.ne.s32.totalorder %s31, %s34
      %p40 = scmp.eq.s32.totalorder %s21, 0
      %p41 = por %p39, %p40
      %p42 = scmp.ne.s32.totalorder %s31, %s34
      %p43 = scmp.eq.s32.totalorder %s26, 1
      %p44 = por %p42, %p43
      %p45 = scmp.ne.s32.totalorder %s34, %s35
      %p46 = scmp.eq.s32.totalorder %s26, 0
      %p47 = por %p45, %p46
      %p48 = scmp.ne.s32.totalorder %s34, %s35
      %p49 = scmp.eq.s32.totalorder %s27, 1
      %p50 = por %p48, %p49
      %p52 = scmp.ne.s32.totalorder %s35, %s51
      %p53 = scmp.eq.s32.totalorder %s27, 0
      %p54 = por %p52, %p53
      %s56 = sadd.s32 %s55, 1
      %p59 = scmp.eq.s32.totalorder %s21, 1
      %p60 = scmp.ne.s32.totalorder %s55, %s57
      %p61 = scmp.eq.s32.totalorder %s21, 0
      %p62 = por %p60, %p61
      %p63 = scmp.ne.s32.totalorder %s55, %s57
      %p64 = scmp.eq.s32.totalorder %s26, 1
      %p65 = por %p63, %p64
      %p66 = scmp.ne.s32.totalorder %s57, %s58
      %p67 = scmp.eq.s32.totalorder %s26, 0
      %p68 = por %p66, %p67
      %p69 = scmp.ne.s32.totalorder %s57, %s58
      %p70 = scmp.eq.s32.totalorder %s27, 1
      %p71 = por %p69, %p70
      %p73 = scmp.ne.s32.totalorder %s58, %s72
      %p74 = scmp.eq.s32.totalorder %s27, 0
      %p75 = por %p73, %p74
      %s77 = sadd.s32 %s76, 1
      %p80 = scmp.eq.s32.totalorder %s21, 1
      %p81 = scmp.ne.s32.totalorder %s76, %s78
      %p82 = scmp.eq.s32.totalorder %s21, 0
      %p83 = por %p81, %p82
      %p84 = scmp.ne.s32.totalorder %s76, %s78
      %p85 = scmp.eq.s32.totalorder %s26, 1
      %p86 = por %p84, %p85
      %p87 = scmp.ne.s32.totalorder %s78, %s79
      %p88 = scmp.eq.s32.totalorder %s26, 0
      %p89 = por %p87, %p88
      %p90 = scmp.ne.s32.totalorder %s78, %s79
      %p91 = scmp.eq.s32.totalorder %s27, 1
      %p92 = por %p90, %p91
      %p94 = scmp.ne.s32.totalorder %s79, %s93
      %p95 = scmp.eq.s32.totalorder %s27, 0
      %p96 = por %p94, %p95
      %s98 = sadd.s32 %s97, 1
      %p101 = scmp.eq.s32.totalorder %s21, 1
      %p102 = scmp.ne.s32.totalorder %s97, %s99
      %p103 = scmp.eq.s32.totalorder %s21, 0
      %p104 = por %p102, %p103
      %p105 = scmp.ne.s32.totalorder %s97, %s99
      %p106 = scmp.eq.s32.totalorder %s26, 1
      %p107 = por %p105, %p106
      %p108 = scmp.ne.s32.totalorder %s99, %s100
      %p109 = scmp.eq.s32.totalorder %s26, 0
      %p110 = por %p108, %p109
      %p111 = scmp.ne.s32.totalorder %s99, %s100
      %p112 = scmp.eq.s32.totalorder %s27, 1
      %p113 = por %p111, %p112
      %p115 = scmp.ne.s32.totalorder %s100, %s114
      %p116 = scmp.eq.s32.totalorder %s27, 0
      %p117 = por %p115, %p116
      %s119 = sadd.s32 %s118, 1
      %p122 = scmp.eq.s32.totalorder %s21, 1
      %p123 = scmp.ne.s32.totalorder %s118, %s120
      %p124 = scmp.eq.s32.totalorder %s21, 0
      %p125 = por %p123, %p124
      %p126 = scmp.ne.s32.totalorder %s118, %s120
      %p127 = scmp.eq.s32.totalorder %s26, 1
      %p128 = por %p126, %p127
      %p129 = scmp.ne.s32.totalorder %s120, %s121
      %p130 = scmp.eq.s32.totalorder %s26, 0
      %p131 = por %p129, %p130
      %p132 = scmp.ne.s32.totalorder %s120, %s121
      %p133 = scmp.eq.s32.totalorder %s27, 1
      %p134 = por %p132, %p133
      %p136 = scmp.ne.s32.totalorder %s121, %s135
      %p137 = scmp.eq.s32.totalorder %s27, 0
      %p138 = por %p136, %p137
      %s140 = sadd.s32 %s139, 1
      %p143 = scmp.eq.s32.totalorder %s21, 1
      %p144 = scmp.ne.s32.totalorder %s139, %s141
      %p145 = scmp.eq.s32.totalorder %s21, 0
      %p146 = por %p144, %p145
      %p147 = scmp.ne.s32.totalorder %s139, %s141
      %p148 = scmp.eq.s32.totalorder %s26, 1
      %p149 = por %p147, %p148
      %p150 = scmp.ne.s32.totalorder %s141, %s142
      %p151 = scmp.eq.s32.totalorder %s26, 0
      %p152 = por %p150, %p151
      %p153 = scmp.ne.s32.totalorder %s141, %s142
      %p154 = scmp.eq.s32.totalorder %s27, 1
      %p155 = por %p153, %p154
      %p157 = scmp.ne.s32.totalorder %s142, %s156
      %p158 = scmp.eq.s32.totalorder %s27, 0
      %p159 = por %p157, %p158
      %s161 = sadd.s32 %s160, 1
      %p164 = scmp.eq.s32.totalorder %s21, 1
      %p165 = scmp.ne.s32.totalorder %s160, %s162
      %p166 = scmp.eq.s32.totalorder %s21, 0
      %p167 = por %p165, %p166
      %p168 = scmp.ne.s32.totalorder %s160, %s162
      %p169 = scmp.eq.s32.totalorder %s26, 1
      %p170 = por %p168, %p169
      %p171 = scmp.ne.s32.totalorder %s162, %s163
      %p172 = scmp.eq.s32.totalorder %s26, 0
      %p173 = por %p171, %p172
      %p174 = scmp.ne.s32.totalorder %s162, %s163
      %p175 = scmp.eq.s32.totalorder %s27, 1
      %p176 = por %p174, %p175
      %p178 = scmp.ne.s32.totalorder %s163, %s177
      %p179 = scmp.eq.s32.totalorder %s27, 0
      %p180 = por %p178, %p179
      %s181 = ssub.s32 %s21, %s28
      %p182 = scmp.eq.s32.totalorder %s181, 0
      %s184 = sadd.s32 %s183, 1
      %s185 = scalar_select %p182, %s183, %s184
      %p188 = pneg %p182
      %p189 = scmp.eq.s32.totalorder %s21, 1
      %p190 = por %p188, %p189
      %p191 = scmp.ne.s32.totalorder %s183, %s186
      %p192 = scmp.eq.s32.totalorder %s21, 0
      %p193 = por %p191, %p192
      %p194 = scmp.ne.s32.totalorder %s183, %s186
      %p195 = scmp.eq.s32.totalorder %s26, 1
      %p196 = por %p194, %p195
      %p197 = scmp.ne.s32.totalorder %s186, %s187
      %p198 = scmp.eq.s32.totalorder %s26, 0
      %p199 = por %p197, %p198
      %p200 = scmp.ne.s32.totalorder %s186, %s187
      %p201 = scmp.eq.s32.totalorder %s27, 1
      %p202 = por %p200, %p201
      %p204 = scmp.ne.s32.totalorder %s187, %s203
      %p205 = scmp.eq.s32.totalorder %s27, 0
      %p206 = por %p204, %p205
      %p207 = scmp.le.s32.totalorder 1, %s21
      %p208 = scmp.lt.s32.totalorder %s21, 3
      %p209 = pnand %p207, %p208
      %p210 = pneg %p209
      // Predicated region
      $region9: #{tpu_custom_call.1} parent=5 // pred_check
        _
      $region10: #{tpu_custom_call.1} parent=5 // pred_check_branch
        %212 = sbr.rel (%p209) target = $region12
      $region11: #{tpu_custom_call.1} parent=5 // pred_region
        %s213 = ssub.s32 %s21, 1
        // Predicated region
        $region13: #{tpu_custom_call.1} parent=11 // pred_check
          %p214 = pneg %p68
        $region14: #{tpu_custom_call.1} parent=11 // pred_check_branch
          %216 = sbr.rel (%p214) target = $region16
        $region15: #{tpu_custom_call.1} parent=11 // pred_region
          %s218 = ssub.s32 2048, 2048
          %219 = vsyncadd [#allocation7], %s218
          %s220 = sshll.u32 [#allocation6], 4
          %s221 = int_to_ptr.vmem [resolvable:$true] %s220
          %226 = dma.hbm_to_vmem [thread:$0]  %s1, 2048, %s221, [#allocation7], 128, 128, 8
        $region16: #{tpu_custom_call.1} parent=11 // pred_fallthru
          _
        // Predicated region
        $region17: #{tpu_custom_call.1} parent=11 // pred_check
          %p227 = pneg %p89
        $region18: #{tpu_custom_call.1} parent=11 // pred_check_branch
          %229 = sbr.rel (%p227) target = $region20
        $region19: #{tpu_custom_call.1} parent=11 // pred_region
          _
        $region20: #{tpu_custom_call.1} parent=11 // pred_fallthru
          _
        // Predicated region
        $region21: #{tpu_custom_call.1} parent=11 // pred_check
          %p230 = pneg %p110
        $region22: #{tpu_custom_call.1} parent=11 // pred_check_branch
          %232 = sbr.rel (%p230) target = $region24
        $region23: #{tpu_custom_call.1} parent=11 // pred_region
          %s234 = ssub.s32 256, 256
          %235 = vsyncadd [#allocation7], %s234
          %s236 = sshll.u32 [#allocation8], 4
          %s237 = int_to_ptr.vmem [resolvable:$true] %s236
          %242 = dma.hbm_to_vmem [thread:$0]  %s3, 256, %s237, [#allocation7], 128, 128, 8
        $region24: #{tpu_custom_call.1} parent=11 // pred_fallthru
          _
        // Predicated region
        $region25: #{tpu_custom_call.1} parent=11 // pred_check
          %p243 = pneg %p131
        $region26: #{tpu_custom_call.1} parent=11 // pred_check_branch
          %245 = sbr.rel (%p243) target = $region28
        $region27: #{tpu_custom_call.1} parent=11 // pred_region
          _
        $region28: #{tpu_custom_call.1} parent=11 // pred_fallthru
          _
        // Predicated region
        $region29: #{tpu_custom_call.1} parent=11 // pred_check
          %p246 = pneg %p152
        $region30: #{tpu_custom_call.1} parent=11 // pred_check_branch
          %248 = sbr.rel (%p246) target = $region32
        $region31: #{tpu_custom_call.1} parent=11 // pred_region
          %s250 = ssub.s32 2048, 2048
          %251 = vsyncadd [#allocation10], %s250
          %s252 = sshll.u32 [#allocation9], 4
          %s253 = int_to_ptr.vmem [resolvable:$true] %s252
          %258 = dma.hbm_to_vmem [thread:$0]  %s5, 2048, %s253, [#allocation10], 128, 128, 8
        $region32: #{tpu_custom_call.1} parent=11 // pred_fallthru
          _
        // Predicated region
        $region33: #{tpu_custom_call.1} parent=11 // pred_check
          %p259 = pneg %p173
        $region34: #{tpu_custom_call.1} parent=11 // pred_check_branch
          %261 = sbr.rel (%p259) target = $region36
        $region35: #{tpu_custom_call.1} parent=11 // pred_region
          _
        $region36: #{tpu_custom_call.1} parent=11 // pred_fallthru
          _
      $region12: #{tpu_custom_call.1} parent=5 // pred_fallthru
        _
      %p262 = scmp.lt.s32.totalorder %s21, 2
      // Predicated region
      $region37: #{tpu_custom_call.1} parent=5 // pred_check
        %p263 = pneg %p262
      $region38: #{tpu_custom_call.1} parent=5 // pred_check_branch
        %265 = sbr.rel (%p263) target = $region40
      $region39: #{tpu_custom_call.1} parent=5 // pred_region
        // Predicated region
        $region41: #{tpu_custom_call.1} parent=39 // pred_check
          %p266 = pneg %p41
        $region42: #{tpu_custom_call.1} parent=39 // pred_check_branch
          %268 = sbr.rel (%p266) target = $region44
        $region43: #{tpu_custom_call.1} parent=39 // pred_region
          %s269 = sand.u32 %s31, 1
          %s270 = scalar_lea.sflag [#allocation4], %s269
          %s271 = sand.u32 %s31, 1
          %s272 = smul.addr %s271, 256
          %s273 = scalar_lea.vmem [#allocation3], %s272
          %s275 = ssub.s32 4096, 4096
          %276 = vsyncadd %s270, %s275
          %s277 = smul.addr %s21, 32
          %s278 = smul.addr %s277, 128
          %s279 = scalar_lea.hbm %s0, %s278
          %s280 = sshll.u32 %s273, 4
          %s281 = int_to_ptr.vmem [resolvable:$true] %s280
          %286 = dma.hbm_to_vmem [thread:$0]  %s279, 4096, %s281, %s270, 128, 128, 8
        $region44: #{tpu_custom_call.1} parent=39 // pred_fallthru
          _
      $region40: #{tpu_custom_call.1} parent=5 // pred_fallthru
        _
      %p287 = scmp.le.s32.totalorder 1, %s21
      %p288 = scmp.lt.s32.totalorder %s21, 3
      %p289 = pnand %p287, %p288
      %p290 = pneg %p289
      // Predicated region
      $region45: #{tpu_custom_call.1} parent=5 // pred_check
        _
      $region46: #{tpu_custom_call.1} parent=5 // pred_check_branch
        %292 = sbr.rel (%p289) target = $region48
      $region47: #{tpu_custom_call.1} parent=5 // pred_region
        %s293 = ssub.s32 %s21, 1
        %s294 = sand.u32 %s34, 1
        %s295 = scalar_lea.sflag [#allocation4], %s294
        %s296 = sand.u32 %s34, 1
        %s297 = smul.addr %s296, 256
        %s298 = scalar_lea.vmem [#allocation3], %s297
        // Predicated region
        $region49: #{tpu_custom_call.1} parent=47 // pred_check
          %p299 = pneg %p47
        $region50: #{tpu_custom_call.1} parent=47 // pred_check_branch
          %301 = sbr.rel (%p299) target = $region52
        $region51: #{tpu_custom_call.1} parent=47 // pred_region
          %302 = dma.done %s295, 4096
        $region52: #{tpu_custom_call.1} parent=47 // pred_fallthru
          _
        // Predicated region
        $region53: #{tpu_custom_call.1} parent=47 // pred_check
          %p303 = pneg %p68
        $region54: #{tpu_custom_call.1} parent=47 // pred_check_branch
          %305 = sbr.rel (%p303) target = $region56
        $region55: #{tpu_custom_call.1} parent=47 // pred_region
          %306 = dma.done [#allocation7], 2048
        $region56: #{tpu_custom_call.1} parent=47 // pred_fallthru
          _
        // Predicated region
        $region57: #{tpu_custom_call.1} parent=47 // pred_check
          %p307 = pneg %p110
        $region58: #{tpu_custom_call.1} parent=47 // pred_check_branch
          %309 = sbr.rel (%p307) target = $region60
        $region59: #{tpu_custom_call.1} parent=47 // pred_region
          %310 = dma.done [#allocation7], 256
        $region60: #{tpu_custom_call.1} parent=47 // pred_fallthru
          _
        // Predicated region
        $region61: #{tpu_custom_call.1} parent=47 // pred_check
          %p311 = pneg %p152
        $region62: #{tpu_custom_call.1} parent=47 // pred_check_branch
          %313 = sbr.rel (%p311) target = $region64
        $region63: #{tpu_custom_call.1} parent=47 // pred_region
          %314 = dma.done [#allocation10], 2048
        $region64: #{tpu_custom_call.1} parent=47 // pred_fallthru
          _
        %s315 = sand.u32 %s34, 1
        %s316 = scalar_lea.sflag [#allocation4], %s315
        %s317 = sand.u32 %s34, 1
        %s318 = smul.addr %s317, 256
        %s319 = scalar_lea.vmem [#allocation3], %s318
        %p320 = pneg %p47
        %p321 = pneg %p44
        %p322 = pneg %p68
        %p323 = pneg %p65
        %p324 = pneg %p89
        %p325 = pneg %p86
        %p326 = pneg %p110
        %p327 = pneg %p107
        %p328 = pneg %p131
        %p329 = pneg %p128
        %p330 = pneg %p152
        %p331 = pneg %p149
        %p332 = pneg %p173
        %p333 = pneg %p170
        %p334 = pneg %p199
        %p335 = pneg %p196
        %s336 = sand.u32 %s186, 1
        %s337 = scalar_lea.sflag [#allocation5], %s336
        %s338 = sand.u32 %s186, 1
        %s339 = smul.addr %s338, 256
        %s340 = scalar_lea.vmem [#allocation11], %s339
        %v341 = vld [vmem:[%s298] sm:$0xff]
        %v342 = vld [vmem:[%s298 + $0x8] sm:$0xff]
        %v343 = vld [vmem:[%s298 + $0x10] sm:$0xff]
        %v344 = vld [vmem:[%s298 + $0x18] sm:$0xff]
        %v345 = vld [vmem:[%s298 + $0x20] sm:$0xff]
        %v346 = vld [vmem:[%s298 + $0x28] sm:$0xff]
        %v347 = vld [vmem:[%s298 + $0x30] sm:$0xff]
        %v348 = vld [vmem:[%s298 + $0x38] sm:$0xff]
        %v349 = vld [vmem:[%s298 + $0x40] sm:$0xff]
        %v350 = vld [vmem:[%s298 + $0x48] sm:$0xff]
        %v351 = vld [vmem:[%s298 + $0x50] sm:$0xff]
        %v352 = vld [vmem:[%s298 + $0x58] sm:$0xff]
        %v353 = vld [vmem:[%s298 + $0x60] sm:$0xff]
        %v354 = vld [vmem:[%s298 + $0x68] sm:$0xff]
        %v355 = vld [vmem:[%s298 + $0x70] sm:$0xff]
        %v356 = vld [vmem:[%s298 + $0x78] sm:$0xff]
        %v357 = vld [vmem:[%s298 + $0x80] sm:$0xff]
        %v358 = vld [vmem:[%s298 + $0x88] sm:$0xff]
        %v359 = vld [vmem:[%s298 + $0x90] sm:$0xff]
        %v360 = vld [vmem:[%s298 + $0x98] sm:$0xff]
        %v361 = vld [vmem:[%s298 + $0xa0] sm:$0xff]
        %v362 = vld [vmem:[%s298 + $0xa8] sm:$0xff]
        %v363 = vld [vmem:[%s298 + $0xb0] sm:$0xff]
        %v364 = vld [vmem:[%s298 + $0xb8] sm:$0xff]
        %v365 = vld [vmem:[%s298 + $0xc0] sm:$0xff]
        %v366 = vld [vmem:[%s298 + $0xc8] sm:$0xff]
        %v367 = vld [vmem:[%s298 + $0xd0] sm:$0xff]
        %v368 = vld [vmem:[%s298 + $0xd8] sm:$0xff]
        %v369 = vld [vmem:[%s298 + $0xe0] sm:$0xff]
        %v370 = vld [vmem:[%s298 + $0xe8] sm:$0xff]
        %v371 = vld [vmem:[%s298 + $0xf0] sm:$0xff]
        %v372 = vld [vmem:[%s298 + $0xf8] sm:$0xff]
        %v373 = vld [vmem:[#allocation6] sm:$0xff]
        %v374 = vld [vmem:[#allocation6 + $0x8] sm:$0xff]
        %v375 = vld [vmem:[#allocation6 + $0x10] sm:$0xff]
        %v376 = vld [vmem:[#allocation6 + $0x18] sm:$0xff]
        %v377 = vld [vmem:[#allocation6 + $0x20] sm:$0xff]
        %v378 = vld [vmem:[#allocation6 + $0x28] sm:$0xff]
        %v379 = vld [vmem:[#allocation6 + $0x30] sm:$0xff]
        %v380 = vld [vmem:[#allocation6 + $0x38] sm:$0xff]
        %v381 = vld [vmem:[#allocation6 + $0x40] sm:$0xff]
        %v382 = vld [vmem:[#allocation6 + $0x48] sm:$0xff]
        %v383 = vld [vmem:[#allocation6 + $0x50] sm:$0xff]
        %v384 = vld [vmem:[#allocation6 + $0x58] sm:$0xff]
        %v385 = vld [vmem:[#allocation6 + $0x60] sm:$0xff]
        %v386 = vld [vmem:[#allocation6 + $0x68] sm:$0xff]
        %v387 = vld [vmem:[#allocation6 + $0x70] sm:$0xff]
        %v388 = vld [vmem:[#allocation6 + $0x78] sm:$0xff]
        %v389 = vld [vmem:[%s2] sm:$0x1]
        %v391 = vlaneseq
        %v392 = vshrl.u32 %v391, 7
        %v393 = vsub.s32 0, %v392
        %v394 = vrot.slane %v389, %v393
        %396 = vmatprep.subr.mxu0 0.0
        %397 = vmatpush1.msra.mxu0 %v373
        %398 = vmatprep.subr.mxu0 0.0
        %399 = vmatpush1.msra.mxu0 %v374
        %400 = vmatprep.subr.mxu0 0.0
        %401 = vmatpush1.msra.mxu0 %v375
        %402 = vmatprep.subr.mxu0 0.0
        %403 = vmatpush1.msra.mxu0 %v376
        %404 = vmatprep.subr.mxu0 0.0
        %405 = vmatpush1.msra.mxu0 %v377
        %406 = vmatprep.subr.mxu0 0.0
        %407 = vmatpush1.msra.mxu0 %v378
        %408 = vmatprep.subr.mxu0 0.0
        %409 = vmatpush1.msra.mxu0 %v379
        %410 = vmatprep.subr.mxu0 0.0
        %411 = vmatpush1.msra.mxu0 %v380
        %412 = vmatprep.subr.mxu0 0.0
        %413 = vmatpush1.msra.mxu0 %v381
        %414 = vmatprep.subr.mxu0 0.0
        %415 = vmatpush1.msra.mxu0 %v382
        %416 = vmatprep.subr.mxu0 0.0
        %417 = vmatpush1.msra.mxu0 %v383
        %418 = vmatprep.subr.mxu0 0.0
        %419 = vmatpush1.msra.mxu0 %v384
        %420 = vmatprep.subr.mxu0 0.0
        %421 = vmatpush1.msra.mxu0 %v385
        %422 = vmatprep.subr.mxu0 0.0
        %423 = vmatpush1.msra.mxu0 %v386
        %424 = vmatprep.subr.mxu0 0.0
        %425 = vmatpush1.msra.mxu0 %v387
        %426 = vmatprep.subr.mxu0 0.0
        %427 = vmatpush1.msra.mxu0 %v388
        %428 = vmatprep.subr.mxu0 0.0
        %429 = vmatpush1.msra.mxu0 0.0
        %430 = vmatprep.subr.mxu0 0.0
        %431 = vmatpush1.msra.mxu0 0.0
        %432 = vmatprep.subr.mxu0 0.0
        %433 = vmatpush1.msra.mxu0 0.0
        %434 = vmatprep.subr.mxu0 0.0
        %435 = vmatpush1.msra.mxu0 0.0
        %436 = vmatprep.subr.mxu0 0.0
        %437 = vmatpush1.msra.mxu0 0.0
        %438 = vmatprep.subr.mxu0 0.0
        %439 = vmatpush1.msra.mxu0 0.0
        %440 = vmatprep.subr.mxu0 0.0
        %441 = vmatpush1.msra.mxu0 0.0
        %442 = vmatprep.subr.mxu0 0.0
        %443 = vmatpush1.msra.mxu0 0.0
        %444 = vmatprep.subr.mxu0 0.0
        %445 = vmatpush1.msra.mxu0 0.0
        %446 = vmatprep.subr.mxu0 0.0
        %447 = vmatpush1.msra.mxu0 0.0
        %448 = vmatprep.subr.mxu0 0.0
        %449 = vmatpush1.msra.mxu0 0.0
        %450 = vmatprep.subr.mxu0 0.0
        %451 = vmatpush1.msra.mxu0 0.0
        %452 = vmatprep.subr.mxu0 0.0
        %453 = vmatpush1.msra.mxu0 0.0
        %454 = vmatprep.subr.mxu0 0.0
        %455 = vmatpush1.msra.mxu0 0.0
        %456 = vmatprep.subr.mxu0 0.0
        %457 = vmatpush1.msra.mxu0 0.0
        %458 = vmatprep.subr.mxu0 0.0
        %459 = vmatpush1.msra.mxu0 0.0
        %460 = vmatprep.mubr.f32.mxu0 0.0
        %461 = vmatmul.mubr.f32.gmra.mrb[0].mxu0 %v341
        %v462 = vpop.f32.mrb[0].mxu0
        %v463 = vadd.f32 %v394, %v462
        %v464 = vpop.f32.mrb[0].mxu0
        %465 = vmatprep.mubr.f32.mxu0 0.0
        %466 = vmatmul.mubr.f32.gmra.mrb[0].mxu0 %v342
        %v467 = vpop.f32.mrb[0].mxu0
        %v468 = vadd.f32 %v394, %v467
        %v469 = vpop.f32.mrb[0].mxu0
        %470 = vmatprep.mubr.f32.mxu0 0.0
        %471 = vmatmul.mubr.f32.gmra.mrb[0].mxu0 %v343
        %v472 = vpop.f32.mrb[0].mxu0
        %v473 = vadd.f32 %v394, %v472
        %v474 = vpop.f32.mrb[0].mxu0
        %475 = vmatprep.mubr.f32.mxu0 0.0
        %476 = vmatmul.mubr.f32.gmra.mrb[0].mxu0 %v344
        %v477 = vpop.f32.mrb[0].mxu0
        %v478 = vadd.f32 %v394, %v477
        %v479 = vpop.f32.mrb[0].mxu0
        %480 = vmatprep.mubr.f32.mxu0 0.0
        %481 = vmatmul.mubr.f32.gmra.mrb[0].mxu0 %v345
        %v482 = vpop.f32.mrb[0].mxu0
        %v483 = vadd.f32 %v394, %v482
        %v484 = vpop.f32.mrb[0].mxu0
        %485 = vmatprep.mubr.f32.mxu0 0.0
        %486 = vmatmul.mubr.f32.gmra.mrb[0].mxu0 %v346
        %v487 = vpop.f32.mrb[0].mxu0
        %v488 = vadd.f32 %v394, %v487
        %v489 = vpop.f32.mrb[0].mxu0
        %490 = vmatprep.mubr.f32.mxu0 0.0
        %491 = vmatmul.mubr.f32.gmra.mrb[0].mxu0 %v347
        %v492 = vpop.f32.mrb[0].mxu0
        %v493 = vadd.f32 %v394, %v492
        %v494 = vpop.f32.mrb[0].mxu0
        %495 = vmatprep.mubr.f32.mxu0 0.0
        %496 = vmatmul.mubr.f32.gmra.mrb[0].mxu0 %v348
        %v497 = vpop.f32.mrb[0].mxu0
        %v498 = vadd.f32 %v394, %v497
        %v499 = vpop.f32.mrb[0].mxu0
        %500 = vmatprep.mubr.f32.mxu0 0.0
        %501 = vmatmul.mubr.f32.gmra.mrb[0].mxu0 %v349
        %v502 = vpop.f32.mrb[0].mxu0
        %v503 = vadd.f32 %v394, %v502
        %v504 = vpop.f32.mrb[0].mxu0
        %505 = vmatprep.mubr.f32.mxu0 0.0
        %506 = vmatmul.mubr.f32.gmra.mrb[0].mxu0 %v350
        %v507 = vpop.f32.mrb[0].mxu0
        %v508 = vadd.f32 %v394, %v507
        %v509 = vpop.f32.mrb[0].mxu0
        %510 = vmatprep.mubr.f32.mxu0 0.0
        %511 = vmatmul.mubr.f32.gmra.mrb[0].mxu0 %v351
        %v512 = vpop.f32.mrb[0].mxu0
        %v513 = vadd.f32 %v394, %v512
        %v514 = vpop.f32.mrb[0].mxu0
        %515 = vmatprep.mubr.f32.mxu0 0.0
        %516 = vmatmul.mubr.f32.gmra.mrb[0].mxu0 %v352
        %v517 = vpop.f32.mrb[0].mxu0
        %v518 = vadd.f32 %v394, %v517
        %v519 = vpop.f32.mrb[0].mxu0
        %520 = vmatprep.mubr.f32.mxu0 0.0
        %521 = vmatmul.mubr.f32.gmra.mrb[0].mxu0 %v353
        %v522 = vpop.f32.mrb[0].mxu0
        %v523 = vadd.f32 %v394, %v522
        %v524 = vpop.f32.mrb[0].mxu0
        %525 = vmatprep.mubr.f32.mxu0 0.0
        %526 = vmatmul.mubr.f32.gmra.mrb[0].mxu0 %v354
        %v527 = vpop.f32.mrb[0].mxu0
        %v528 = vadd.f32 %v394, %v527
        %v529 = vpop.f32.mrb[0].mxu0
        %530 = vmatprep.mubr.f32.mxu0 0.0
        %531 = vmatmul.mubr.f32.gmra.mrb[0].mxu0 %v355
        %v532 = vpop.f32.mrb[0].mxu0
        %v533 = vadd.f32 %v394, %v532
        %v534 = vpop.f32.mrb[0].mxu0
        %535 = vmatprep.mubr.f32.mxu0 0.0
        %536 = vmatmul.mubr.f32.gmra.mrb[0].mxu0 %v356
        %v537 = vpop.f32.mrb[0].mxu0
        %v538 = vadd.f32 %v394, %v537
        %v539 = vpop.f32.mrb[0].mxu0
        %540 = vmatprep.mubr.f32.mxu0 0.0
        %541 = vmatmul.mubr.f32.gmra.mrb[0].mxu0 %v357
        %v542 = vpop.f32.mrb[0].mxu0
        %v543 = vadd.f32 %v394, %v542
        %v544 = vpop.f32.mrb[0].mxu0
        %545 = vmatprep.mubr.f32.mxu0 0.0
        %546 = vmatmul.mubr.f32.gmra.mrb[0].mxu0 %v358
        %v547 = vpop.f32.mrb[0].mxu0
        %v548 = vadd.f32 %v394, %v547
        %v549 = vpop.f32.mrb[0].mxu0
        %550 = vmatprep.mubr.f32.mxu0 0.0
        %551 = vmatmul.mubr.f32.gmra.mrb[0].mxu0 %v359
        %v552 = vpop.f32.mrb[0].mxu0
        %v553 = vadd.f32 %v394, %v552
        %v554 = vpop.f32.mrb[0].mxu0
        %555 = vmatprep.mubr.f32.mxu0 0.0
        %556 = vmatmul.mubr.f32.gmra.mrb[0].mxu0 %v360
        %v557 = vpop.f32.mrb[0].mxu0
        %v558 = vadd.f32 %v394, %v557
        %v559 = vpop.f32.mrb[0].mxu0
        %560 = vmatprep.mubr.f32.mxu0 0.0
        %561 = vmatmul.mubr.f32.gmra.mrb[0].mxu0 %v361
        %v562 = vpop.f32.mrb[0].mxu0
        %v563 = vadd.f32 %v394, %v562
        %v564 = vpop.f32.mrb[0].mxu0
        %565 = vmatprep.mubr.f32.mxu0 0.0
        %566 = vmatmul.mubr.f32.gmra.mrb[0].mxu0 %v362
        %v567 = vpop.f32.mrb[0].mxu0
        %v568 = vadd.f32 %v394, %v567
        %v569 = vpop.f32.mrb[0].mxu0
        %570 = vmatprep.mubr.f32.mxu0 0.0
        %571 = vmatmul.mubr.f32.gmra.mrb[0].mxu0 %v363
        %v572 = vpop.f32.mrb[0].mxu0
        %v573 = vadd.f32 %v394, %v572
        %v574 = vpop.f32.mrb[0].mxu0
        %575 = vmatprep.mubr.f32.mxu0 0.0
        %576 = vmatmul.mubr.f32.gmra.mrb[0].mxu0 %v364
        %v577 = vpop.f32.mrb[0].mxu0
        %v578 = vadd.f32 %v394, %v577
        %v579 = vpop.f32.mrb[0].mxu0
        %580 = vmatprep.mubr.f32.mxu0 0.0
        %581 = vmatmul.mubr.f32.gmra.mrb[0].mxu0 %v365
        %v582 = vpop.f32.mrb[0].mxu0
        %v583 = vadd.f32 %v394, %v582
        %v584 = vpop.f32.mrb[0].mxu0
        %585 = vmatprep.mubr.f32.mxu0 0.0
        %586 = vmatmul.mubr.f32.gmra.mrb[0].mxu0 %v366
        %v587 = vpop.f32.mrb[0].mxu0
        %v588 = vadd.f32 %v394, %v587
        %v589 = vpop.f32.mrb[0].mxu0
        %590 = vmatprep.mubr.f32.mxu0 0.0
        %591 = vmatmul.mubr.f32.gmra.mrb[0].mxu0 %v367
        %v592 = vpop.f32.mrb[0].mxu0
        %v593 = vadd.f32 %v394, %v592
        %v594 = vpop.f32.mrb[0].mxu0
        %595 = vmatprep.mubr.f32.mxu0 0.0
        %596 = vmatmul.mubr.f32.gmra.mrb[0].mxu0 %v368
        %v597 = vpop.f32.mrb[0].mxu0
        %v598 = vadd.f32 %v394, %v597
        %v599 = vpop.f32.mrb[0].mxu0
        %600 = vmatprep.mubr.f32.mxu0 0.0
        %601 = vmatmul.mubr.f32.gmra.mrb[0].mxu0 %v369
        %v602 = vpop.f32.mrb[0].mxu0
        %v603 = vadd.f32 %v394, %v602
        %v604 = vpop.f32.mrb[0].mxu0
        %605 = vmatprep.mubr.f32.mxu0 0.0
        %606 = vmatmul.mubr.f32.gmra.mrb[0].mxu0 %v370
        %v607 = vpop.f32.mrb[0].mxu0
        %v608 = vadd.f32 %v394, %v607
        %v609 = vpop.f32.mrb[0].mxu0
        %610 = vmatprep.mubr.f32.mxu0 0.0
        %611 = vmatmul.mubr.f32.gmra.mrb[0].mxu0 %v371
        %v612 = vpop.f32.mrb[0].mxu0
        %v613 = vadd.f32 %v394, %v612
        %v614 = vpop.f32.mrb[0].mxu0
        %615 = vmatprep.mubr.f32.mxu0 0.0
        %616 = vmatmul.mubr.f32.gmra.mrb[0].mxu0 %v372
        %v617 = vpop.f32.mrb[0].mxu0
        %v618 = vadd.f32 %v394, %v617
        %v619 = vpop.f32.mrb[0].mxu0
        %620 = vdwg.mxu0
        %621 = vst [vmem:[#allocation2] sm:$0xff] 0.0
        %622 = vst [vmem:[#allocation2 + $0x8] sm:$0xff] 0.0
        %623 = vst [vmem:[#allocation2 + $0x10] sm:$0x3] 0.0
        %624 = vst [vmem:[#allocation2 + $0x18] sm:$0xff] 0.0
        %625 = vst [vmem:[#allocation2 + $0x20] sm:$0xff] 0.0
        %626 = vst [vmem:[#allocation2 + $0x28] sm:$0x3] 0.0
        %627 = vst [vmem:[#allocation2 + $0x30] sm:$0xff] 0.0
        %628 = vst [vmem:[#allocation2 + $0x38] sm:$0xff] 0.0
        %629 = vst [vmem:[#allocation2 + $0x40] sm:$0x3] 0.0
        %630 = vst [vmem:[#allocation2 + $0x48] sm:$0xff] 0.0
        %631 = vst [vmem:[#allocation2 + $0x50] sm:$0xff] 0.0
        %632 = vst [vmem:[#allocation2 + $0x58] sm:$0x3] 0.0
        %633 = vst [vmem:[#allocation2 + $0x60] sm:$0xff] 0.0
        %634 = vst [vmem:[#allocation2 + $0x68] sm:$0xff] 0.0
        %635 = vst [vmem:[#allocation2 + $0x70] sm:$0x3] 0.0
        %636 = vst [vmem:[#allocation2 + $0x78] sm:$0xff] 0.0
        %637 = vst [vmem:[#allocation2 + $0x80] sm:$0xff] 0.0
        %638 = vst [vmem:[#allocation2 + $0x88] sm:$0x3] 0.0
        %639 = vst [vmem:[#allocation2 + $0x90] sm:$0xff] 0.0
        %640 = vst [vmem:[#allocation2 + $0x98] sm:$0xff] 0.0
        %641 = vst [vmem:[#allocation2 + $0xa0] sm:$0x3] 0.0
        %642 = vst [vmem:[#allocation2 + $0xa8] sm:$0xff] 0.0
        %643 = vst [vmem:[#allocation2 + $0xb0] sm:$0xff] 0.0
        %644 = vst [vmem:[#allocation2 + $0xb8] sm:$0x3] 0.0
        %645 = vst [vmem:[#allocation2 + $0xc0] sm:$0xff] 0.0
        %646 = vst [vmem:[#allocation2 + $0xc8] sm:$0xff] 0.0
        %647 = vst [vmem:[#allocation2 + $0xd0] sm:$0x3] 0.0
        %648 = vst [vmem:[#allocation2 + $0xd8] sm:$0xff] 0.0
        %649 = vst [vmem:[#allocation2 + $0xe0] sm:$0xff] 0.0
        %650 = vst [vmem:[#allocation2 + $0xe8] sm:$0x3] 0.0
        %651 = vst [vmem:[#allocation2 + $0xf0] sm:$0xff] 0.0
        %652 = vst [vmem:[#allocation2 + $0xf8] sm:$0xff] 0.0
        %653 = vst [vmem:[#allocation2 + $0x100] sm:$0x3] 0.0
        %654 = vst [vmem:[#allocation2 + $0x108] sm:$0xff] 0.0
        %655 = vst [vmem:[#allocation2 + $0x110] sm:$0xff] 0.0
        %656 = vst [vmem:[#allocation2 + $0x118] sm:$0x3] 0.0
        %657 = vst [vmem:[#allocation2 + $0x120] sm:$0xff] 0.0
        %658 = vst [vmem:[#allocation2 + $0x128] sm:$0xff] 0.0
        %659 = vst [vmem:[#allocation2 + $0x130] sm:$0x3] 0.0
        %660 = vst [vmem:[#allocation2 + $0x138] sm:$0xff] 0.0
        %661 = vst [vmem:[#allocation2 + $0x140] sm:$0xff] 0.0
        %662 = vst [vmem:[#allocation2 + $0x148] sm:$0x3] 0.0
        %663 = vst [vmem:[#allocation2 + $0x150] sm:$0xff] 0.0
        %664 = vst [vmem:[#allocation2 + $0x158] sm:$0xff] 0.0
        %665 = vst [vmem:[#allocation2 + $0x160] sm:$0x3] 0.0
        %666 = vst [vmem:[#allocation2 + $0x168] sm:$0xff] 0.0
        %667 = vst [vmem:[#allocation2 + $0x170] sm:$0xff] 0.0
        %668 = vst [vmem:[#allocation2 + $0x178] sm:$0x3] 0.0
        %669 = vst [vmem:[#allocation2 + $0x180] sm:$0xff] 0.0
        %670 = vst [vmem:[#allocation2 + $0x188] sm:$0xff] 0.0
        %671 = vst [vmem:[#allocation2 + $0x190] sm:$0x3] 0.0
        %672 = vst [vmem:[#allocation2 + $0x198] sm:$0xff] 0.0
        %673 = vst [vmem:[#allocation2 + $0x1a0] sm:$0xff] 0.0
        %674 = vst [vmem:[#allocation2 + $0x1a8] sm:$0x3] 0.0
        %s675 = scalar_lea.vmem [#allocation2], 24
        %676 = vst [vmem:[%s675 + $0x1] sm:$0xff] %v463
        %677 = vst [vmem:[%s675 + $0x9] sm:$0xff] %v468
        %678 = vst [vmem:[%s675 + $0x19] sm:$0xff] %v473
        %679 = vst [vmem:[%s675 + $0x21] sm:$0xff] %v478
        %680 = vst [vmem:[%s675 + $0x31] sm:$0xff] %v483
        %681 = vst [vmem:[%s675 + $0x39] sm:$0xff] %v488
        %682 = vst [vmem:[%s675 + $0x49] sm:$0xff] %v493
        %683 = vst [vmem:[%s675 + $0x51] sm:$0xff] %v498
        %684 = vst [vmem:[%s675 + $0x61] sm:$0xff] %v503
        %685 = vst [vmem:[%s675 + $0x69] sm:$0xff] %v508
        %686 = vst [vmem:[%s675 + $0x79] sm:$0xff] %v513
        %687 = vst [vmem:[%s675 + $0x81] sm:$0xff] %v518
        %688 = vst [vmem:[%s675 + $0x91] sm:$0xff] %v523
        %689 = vst [vmem:[%s675 + $0x99] sm:$0xff] %v528
        %690 = vst [vmem:[%s675 + $0xa9] sm:$0xff] %v533
        %691 = vst [vmem:[%s675 + $0xb1] sm:$0xff] %v538
        %692 = vst [vmem:[%s675 + $0xc1] sm:$0xff] %v543
        %693 = vst [vmem:[%s675 + $0xc9] sm:$0xff] %v548
        %694 = vst [vmem:[%s675 + $0xd9] sm:$0xff] %v553
        %695 = vst [vmem:[%s675 + $0xe1] sm:$0xff] %v558
        %696 = vst [vmem:[%s675 + $0xf1] sm:$0xff] %v563
        %697 = vst [vmem:[%s675 + $0xf9] sm:$0xff] %v568
        %698 = vst [vmem:[%s675 + $0x109] sm:$0xff] %v573
        %699 = vst [vmem:[%s675 + $0x111] sm:$0xff] %v578
        %700 = vst [vmem:[%s675 + $0x121] sm:$0xff] %v583
        %701 = vst [vmem:[%s675 + $0x129] sm:$0xff] %v588
        %702 = vst [vmem:[%s675 + $0x139] sm:$0xff] %v593
        %703 = vst [vmem:[%s675 + $0x141] sm:$0xff] %v598
        %704 = vst [vmem:[%s675 + $0x151] sm:$0xff] %v603
        %705 = vst [vmem:[%s675 + $0x159] sm:$0xff] %v608
        %706 = vst [vmem:[%s675 + $0x169] sm:$0xff] %v613
        %707 = vst [vmem:[%s675 + $0x171] sm:$0xff] %v618
        %v708 = vld [vmem:[#allocation8] sm:$0xff]
        %v709 = vld [vmem:[#allocation8 + $0x8] sm:$0x1]
        %v710 = vld [vmem:[#allocation2] sm:$0xff]
        %v711 = vld [vmem:[#allocation2 + $0x8] sm:$0xff]
        %v712 = vld [vmem:[#allocation2 + $0x18] sm:$0xff]
        %v713 = vld [vmem:[#allocation2 + $0x20] sm:$0xff]
        %v714 = vld [vmem:[#allocation2 + $0x30] sm:$0xff]
        %v715 = vld [vmem:[#allocation2 + $0x38] sm:$0xff]
        %v716 = vld [vmem:[#allocation2 + $0x48] sm:$0xff]
        %v717 = vld [vmem:[#allocation2 + $0x50] sm:$0xff]
        %v718 = vld [vmem:[#allocation2 + $0x60] sm:$0xff]
        %v719 = vld [vmem:[#allocation2 + $0x68] sm:$0xff]
        %v720 = vld [vmem:[#allocation2 + $0x78] sm:$0xff]
        %v721 = vld [vmem:[#allocation2 + $0x80] sm:$0xff]
        %v722 = vld [vmem:[#allocation2 + $0x90] sm:$0xff]
        %v723 = vld [vmem:[#allocation2 + $0x98] sm:$0xff]
        %v724 = vld [vmem:[#allocation2 + $0xa8] sm:$0xff]
        %v725 = vld [vmem:[#allocation2 + $0xb0] sm:$0xff]
        %v726 = vld [vmem:[#allocation2 + $0xc0] sm:$0xff]
        %v727 = vld [vmem:[#allocation2 + $0xc8] sm:$0xff]
        %v728 = vld [vmem:[#allocation2 + $0xd8] sm:$0xff]
        %v729 = vld [vmem:[#allocation2 + $0xe0] sm:$0xff]
        %v730 = vld [vmem:[#allocation2 + $0xf0] sm:$0xff]
        %v731 = vld [vmem:[#allocation2 + $0xf8] sm:$0xff]
        %v732 = vld [vmem:[#allocation2 + $0x108] sm:$0xff]
        %v733 = vld [vmem:[#allocation2 + $0x110] sm:$0xff]
        %v734 = vld [vmem:[#allocation2 + $0x120] sm:$0xff]
        %v735 = vld [vmem:[#allocation2 + $0x128] sm:$0xff]
        %v736 = vld [vmem:[#allocation2 + $0x138] sm:$0xff]
        %v737 = vld [vmem:[#allocation2 + $0x140] sm:$0xff]
        %v738 = vld [vmem:[#allocation2 + $0x150] sm:$0xff]
        %v739 = vld [vmem:[#allocation2 + $0x158] sm:$0xff]
        %v740 = vld [vmem:[#allocation2 + $0x168] sm:$0xff]
        %v741 = vld [vmem:[#allocation2 + $0x170] sm:$0xff]
        %v742 = vlaneseq
        %v743 = vshrl.u32 %v742, 7
        %v744 = vsub.s32 0, %v743
        %v745 = vrot.slane %v708, %v744
        %v746 = vmul.f32 %v710, %v745
        %v747 = vmul.f32 %v711, %v745
        %v748 = vmul.f32 %v712, %v745
        %v749 = vmul.f32 %v713, %v745
        %v750 = vmul.f32 %v714, %v745
        %v751 = vmul.f32 %v715, %v745
        %v752 = vmul.f32 %v716, %v745
        %v753 = vmul.f32 %v717, %v745
        %v754 = vmul.f32 %v718, %v745
        %v755 = vmul.f32 %v719, %v745
        %v756 = vmul.f32 %v720, %v745
        %v757 = vmul.f32 %v721, %v745
        %v758 = vmul.f32 %v722, %v745
        %v759 = vmul.f32 %v723, %v745
        %v760 = vmul.f32 %v724, %v745
        %v761 = vmul.f32 %v725, %v745
        %v762 = vmul.f32 %v726, %v745
        %v763 = vmul.f32 %v727, %v745
        %v764 = vmul.f32 %v728, %v745
        %v765 = vmul.f32 %v729, %v745
        %v766 = vmul.f32 %v730, %v745
        %v767 = vmul.f32 %v731, %v745
        %v768 = vmul.f32 %v732, %v745
        %v769 = vmul.f32 %v733, %v745
        %v770 = vmul.f32 %v734, %v745
        %v771 = vmul.f32 %v735, %v745
        %v772 = vmul.f32 %v736, %v745
        %v773 = vmul.f32 %v737, %v745
        %v774 = vmul.f32 %v738, %v745
        %v775 = vmul.f32 %v739, %v745
        %v776 = vmul.f32 %v740, %v745
        %v777 = vmul.f32 %v741, %v745
        %v778 = vadd.f32 %v746, 0.0
        %v779 = vadd.f32 %v747, 0.0
        %v780 = vadd.f32 %v748, 0.0
        %v781 = vadd.f32 %v749, 0.0
        %v782 = vadd.f32 %v750, 0.0
        %v783 = vadd.f32 %v751, 0.0
        %v784 = vadd.f32 %v752, 0.0
        %v785 = vadd.f32 %v753, 0.0
        %v786 = vadd.f32 %v754, 0.0
        %v787 = vadd.f32 %v755, 0.0
        %v788 = vadd.f32 %v756, 0.0
        %v789 = vadd.f32 %v757, 0.0
        %v790 = vadd.f32 %v758, 0.0
        %v791 = vadd.f32 %v759, 0.0
        %v792 = vadd.f32 %v760, 0.0
        %v793 = vadd.f32 %v761, 0.0
        %v794 = vadd.f32 %v762, 0.0
        %v795 = vadd.f32 %v763, 0.0
        %v796 = vadd.f32 %v764, 0.0
        %v797 = vadd.f32 %v765, 0.0
        %v798 = vadd.f32 %v766, 0.0
        %v799 = vadd.f32 %v767, 0.0
        %v800 = vadd.f32 %v768, 0.0
        %v801 = vadd.f32 %v769, 0.0
        %v802 = vadd.f32 %v770, 0.0
        %v803 = vadd.f32 %v771, 0.0
        %v804 = vadd.f32 %v772, 0.0
        %v805 = vadd.f32 %v773, 0.0
        %v806 = vadd.f32 %v774, 0.0
        %v807 = vadd.f32 %v775, 0.0
        %v808 = vadd.f32 %v776, 0.0
        %v809 = vadd.f32 %v777, 0.0
        %v810 = vld [vmem:[#allocation2 + $0x1] sm:$0xff]
        %v811 = vld [vmem:[#allocation2 + $0x9] sm:$0xff]
        %v812 = vld [vmem:[#allocation2 + $0x19] sm:$0xff]
        %v813 = vld [vmem:[#allocation2 + $0x21] sm:$0xff]
        %v814 = vld [vmem:[#allocation2 + $0x31] sm:$0xff]
        %v815 = vld [vmem:[#allocation2 + $0x39] sm:$0xff]
        %v816 = vld [vmem:[#allocation2 + $0x49] sm:$0xff]
        %v817 = vld [vmem:[#allocation2 + $0x51] sm:$0xff]
        %v818 = vld [vmem:[#allocation2 + $0x61] sm:$0xff]
        %v819 = vld [vmem:[#allocation2 + $0x69] sm:$0xff]
        %v820 = vld [vmem:[#allocation2 + $0x79] sm:$0xff]
        %v821 = vld [vmem:[#allocation2 + $0x81] sm:$0xff]
        %v822 = vld [vmem:[#allocation2 + $0x91] sm:$0xff]
        %v823 = vld [vmem:[#allocation2 + $0x99] sm:$0xff]
        %v824 = vld [vmem:[#allocation2 + $0xa9] sm:$0xff]
        %v825 = vld [vmem:[#allocation2 + $0xb1] sm:$0xff]
        %v826 = vld [vmem:[#allocation2 + $0xc1] sm:$0xff]
        %v827 = vld [vmem:[#allocation2 + $0xc9] sm:$0xff]
        %v828 = vld [vmem:[#allocation2 + $0xd9] sm:$0xff]
        %v829 = vld [vmem:[#allocation2 + $0xe1] sm:$0xff]
        %v830 = vld [vmem:[#allocation2 + $0xf1] sm:$0xff]
        %v831 = vld [vmem:[#allocation2 + $0xf9] sm:$0xff]
        %v832 = vld [vmem:[#allocation2 + $0x109] sm:$0xff]
        %v833 = vld [vmem:[#allocation2 + $0x111] sm:$0xff]
        %v834 = vld [vmem:[#allocation2 + $0x121] sm:$0xff]
        %v835 = vld [vmem:[#allocation2 + $0x129] sm:$0xff]
        %v836 = vld [vmem:[#allocation2 + $0x139] sm:$0xff]
        %v837 = vld [vmem:[#allocation2 + $0x141] sm:$0xff]
        %v838 = vld [vmem:[#allocation2 + $0x151] sm:$0xff]
        %v839 = vld [vmem:[#allocation2 + $0x159] sm:$0xff]
        %v840 = vld [vmem:[#allocation2 + $0x169] sm:$0xff]
        %v841 = vld [vmem:[#allocation2 + $0x171] sm:$0xff]
        %v842 = vlaneseq
        %v843 = vshrl.u32 %v842, 7
        %v844 = vsub.s32 1, %v843
        %v845 = vrot.slane %v708, %v844
        %v846 = vmul.f32 %v810, %v845
        %v847 = vmul.f32 %v811, %v845
        %v848 = vmul.f32 %v812, %v845
        %v849 = vmul.f32 %v813, %v845
        %v850 = vmul.f32 %v814, %v845
        %v851 = vmul.f32 %v815, %v845
        %v852 = vmul.f32 %v816, %v845
        %v853 = vmul.f32 %v817, %v845
        %v854 = vmul.f32 %v818, %v845
        %v855 = vmul.f32 %v819, %v845
        %v856 = vmul.f32 %v820, %v845
        %v857 = vmul.f32 %v821, %v845
        %v858 = vmul.f32 %v822, %v845
        %v859 = vmul.f32 %v823, %v845
        %v860 = vmul.f32 %v824, %v845
        %v861 = vmul.f32 %v825, %v845
        %v862 = vmul.f32 %v826, %v845
        %v863 = vmul.f32 %v827, %v845
        %v864 = vmul.f32 %v828, %v845
        %v865 = vmul.f32 %v829, %v845
        %v866 = vmul.f32 %v830, %v845
        %v867 = vmul.f32 %v831, %v845
        %v868 = vmul.f32 %v832, %v845
        %v869 = vmul.f32 %v833, %v845
        %v870 = vmul.f32 %v834, %v845
        %v871 = vmul.f32 %v835, %v845
        %v872 = vmul.f32 %v836, %v845
        %v873 = vmul.f32 %v837, %v845
        %v874 = vmul.f32 %v838, %v845
        %v875 = vmul.f32 %v839, %v845
        %v876 = vmul.f32 %v840, %v845
        %v877 = vmul.f32 %v841, %v845
        %v878 = vadd.f32 %v778, %v846
        %v879 = vadd.f32 %v779, %v847
        %v880 = vadd.f32 %v780, %v848
        %v881 = vadd.f32 %v781, %v849
        %v882 = vadd.f32 %v782, %v850
        %v883 = vadd.f32 %v783, %v851
        %v884 = vadd.f32 %v784, %v852
        %v885 = vadd.f32 %v785, %v853
        %v886 = vadd.f32 %v786, %v854
        %v887 = vadd.f32 %v787, %v855
        %v888 = vadd.f32 %v788, %v856
        %v889 = vadd.f32 %v789, %v857
        %v890 = vadd.f32 %v790, %v858
        %v891 = vadd.f32 %v791, %v859
        %v892 = vadd.f32 %v792, %v860
        %v893 = vadd.f32 %v793, %v861
        %v894 = vadd.f32 %v794, %v862
        %v895 = vadd.f32 %v795, %v863
        %v896 = vadd.f32 %v796, %v864
        %v897 = vadd.f32 %v797, %v865
        %v898 = vadd.f32 %v798, %v866
        %v899 = vadd.f32 %v799, %v867
        %v900 = vadd.f32 %v800, %v868
        %v901 = vadd.f32 %v801, %v869
        %v902 = vadd.f32 %v802, %v870
        %v903 = vadd.f32 %v803, %v871
        %v904 = vadd.f32 %v804, %v872
        %v905 = vadd.f32 %v805, %v873
        %v906 = vadd.f32 %v806, %v874
        %v907 = vadd.f32 %v807, %v875
        %v908 = vadd.f32 %v808, %v876
        %v909 = vadd.f32 %v809, %v877
        %v910 = vld [vmem:[#allocation2 + $0x2] sm:$0xff]
        %v911 = vld [vmem:[#allocation2 + $0xa] sm:$0xff]
        %v912 = vld [vmem:[#allocation2 + $0x1a] sm:$0xff]
        %v913 = vld [vmem:[#allocation2 + $0x22] sm:$0xff]
        %v914 = vld [vmem:[#allocation2 + $0x32] sm:$0xff]
        %v915 = vld [vmem:[#allocation2 + $0x3a] sm:$0xff]
        %v916 = vld [vmem:[#allocation2 + $0x4a] sm:$0xff]
        %v917 = vld [vmem:[#allocation2 + $0x52] sm:$0xff]
        %v918 = vld [vmem:[#allocation2 + $0x62] sm:$0xff]
        %v919 = vld [vmem:[#allocation2 + $0x6a] sm:$0xff]
        %v920 = vld [vmem:[#allocation2 + $0x7a] sm:$0xff]
        %v921 = vld [vmem:[#allocation2 + $0x82] sm:$0xff]
        %v922 = vld [vmem:[#allocation2 + $0x92] sm:$0xff]
        %v923 = vld [vmem:[#allocation2 + $0x9a] sm:$0xff]
        %v924 = vld [vmem:[#allocation2 + $0xaa] sm:$0xff]
        %v925 = vld [vmem:[#allocation2 + $0xb2] sm:$0xff]
        %v926 = vld [vmem:[#allocation2 + $0xc2] sm:$0xff]
        %v927 = vld [vmem:[#allocation2 + $0xca] sm:$0xff]
        %v928 = vld [vmem:[#allocation2 + $0xda] sm:$0xff]
        %v929 = vld [vmem:[#allocation2 + $0xe2] sm:$0xff]
        %v930 = vld [vmem:[#allocation2 + $0xf2] sm:$0xff]
        %v931 = vld [vmem:[#allocation2 + $0xfa] sm:$0xff]
        %v932 = vld [vmem:[#allocation2 + $0x10a] sm:$0xff]
        %v933 = vld [vmem:[#allocation2 + $0x112] sm:$0xff]
        %v934 = vld [vmem:[#allocation2 + $0x122] sm:$0xff]
        %v935 = vld [vmem:[#allocation2 + $0x12a] sm:$0xff]
        %v936 = vld [vmem:[#allocation2 + $0x13a] sm:$0xff]
        %v937 = vld [vmem:[#allocation2 + $0x142] sm:$0xff]
        %v938 = vld [vmem:[#allocation2 + $0x152] sm:$0xff]
        %v939 = vld [vmem:[#allocation2 + $0x15a] sm:$0xff]
        %v940 = vld [vmem:[#allocation2 + $0x16a] sm:$0xff]
        %v941 = vld [vmem:[#allocation2 + $0x172] sm:$0xff]
        %v942 = vlaneseq
        %v943 = vshrl.u32 %v942, 7
        %v944 = vsub.s32 2, %v943
        %v945 = vrot.slane %v708, %v944
        %v946 = vmul.f32 %v910, %v945
        %v947 = vmul.f32 %v911, %v945
        %v948 = vmul.f32 %v912, %v945
        %v949 = vmul.f32 %v913, %v945
        %v950 = vmul.f32 %v914, %v945
        %v951 = vmul.f32 %v915, %v945
        %v952 = vmul.f32 %v916, %v945
        %v953 = vmul.f32 %v917, %v945
        %v954 = vmul.f32 %v918, %v945
        %v955 = vmul.f32 %v919, %v945
        %v956 = vmul.f32 %v920, %v945
        %v957 = vmul.f32 %v921, %v945
        %v958 = vmul.f32 %v922, %v945
        %v959 = vmul.f32 %v923, %v945
        %v960 = vmul.f32 %v924, %v945
        %v961 = vmul.f32 %v925, %v945
        %v962 = vmul.f32 %v926, %v945
        %v963 = vmul.f32 %v927, %v945
        %v964 = vmul.f32 %v928, %v945
        %v965 = vmul.f32 %v929, %v945
        %v966 = vmul.f32 %v930, %v945
        %v967 = vmul.f32 %v931, %v945
        %v968 = vmul.f32 %v932, %v945
        %v969 = vmul.f32 %v933, %v945
        %v970 = vmul.f32 %v934, %v945
        %v971 = vmul.f32 %v935, %v945
        %v972 = vmul.f32 %v936, %v945
        %v973 = vmul.f32 %v937, %v945
        %v974 = vmul.f32 %v938, %v945
        %v975 = vmul.f32 %v939, %v945
        %v976 = vmul.f32 %v940, %v945
        %v977 = vmul.f32 %v941, %v945
        %v978 = vadd.f32 %v878, %v946
        %v979 = vadd.f32 %v879, %v947
        %v980 = vadd.f32 %v880, %v948
        %v981 = vadd.f32 %v881, %v949
        %v982 = vadd.f32 %v882, %v950
        %v983 = vadd.f32 %v883, %v951
        %v984 = vadd.f32 %v884, %v952
        %v985 = vadd.f32 %v885, %v953
        %v986 = vadd.f32 %v886, %v954
        %v987 = vadd.f32 %v887, %v955
        %v988 = vadd.f32 %v888, %v956
        %v989 = vadd.f32 %v889, %v957
        %v990 = vadd.f32 %v890, %v958
        %v991 = vadd.f32 %v891, %v959
        %v992 = vadd.f32 %v892, %v960
        %v993 = vadd.f32 %v893, %v961
        %v994 = vadd.f32 %v894, %v962
        %v995 = vadd.f32 %v895, %v963
        %v996 = vadd.f32 %v896, %v964
        %v997 = vadd.f32 %v897, %v965
        %v998 = vadd.f32 %v898, %v966
        %v999 = vadd.f32 %v899, %v967
        %v1000 = vadd.f32 %v900, %v968
        %v1001 = vadd.f32 %v901, %v969
        %v1002 = vadd.f32 %v902, %v970
        %v1003 = vadd.f32 %v903, %v971
        %v1004 = vadd.f32 %v904, %v972
        %v1005 = vadd.f32 %v905, %v973
        %v1006 = vadd.f32 %v906, %v974
        %v1007 = vadd.f32 %v907, %v975
        %v1008 = vadd.f32 %v908, %v976
        %v1009 = vadd.f32 %v909, %v977
        %v1010 = vld [vmem:[%s675] sm:$0xff]
        %v1011 = vld [vmem:[%s675 + $0x8] sm:$0xff]
        %v1012 = vld [vmem:[%s675 + $0x18] sm:$0xff]
        %v1013 = vld [vmem:[%s675 + $0x20] sm:$0xff]
        %v1014 = vld [vmem:[%s675 + $0x30] sm:$0xff]
        %v1015 = vld [vmem:[%s675 + $0x38] sm:$0xff]
        %v1016 = vld [vmem:[%s675 + $0x48] sm:$0xff]
        %v1017 = vld [vmem:[%s675 + $0x50] sm:$0xff]
        %v1018 = vld [vmem:[%s675 + $0x60] sm:$0xff]
        %v1019 = vld [vmem:[%s675 + $0x68] sm:$0xff]
        %v1020 = vld [vmem:[%s675 + $0x78] sm:$0xff]
        %v1021 = vld [vmem:[%s675 + $0x80] sm:$0xff]
        %v1022 = vld [vmem:[%s675 + $0x90] sm:$0xff]
        %v1023 = vld [vmem:[%s675 + $0x98] sm:$0xff]
        %v1024 = vld [vmem:[%s675 + $0xa8] sm:$0xff]
        %v1025 = vld [vmem:[%s675 + $0xb0] sm:$0xff]
        %v1026 = vld [vmem:[%s675 + $0xc0] sm:$0xff]
        %v1027 = vld [vmem:[%s675 + $0xc8] sm:$0xff]
        %v1028 = vld [vmem:[%s675 + $0xd8] sm:$0xff]
        %v1029 = vld [vmem:[%s675 + $0xe0] sm:$0xff]
        %v1030 = vld [vmem:[%s675 + $0xf0] sm:$0xff]
        %v1031 = vld [vmem:[%s675 + $0xf8] sm:$0xff]
        %v1032 = vld [vmem:[%s675 + $0x108] sm:$0xff]
        %v1033 = vld [vmem:[%s675 + $0x110] sm:$0xff]
        %v1034 = vld [vmem:[%s675 + $0x120] sm:$0xff]
        %v1035 = vld [vmem:[%s675 + $0x128] sm:$0xff]
        %v1036 = vld [vmem:[%s675 + $0x138] sm:$0xff]
        %v1037 = vld [vmem:[%s675 + $0x140] sm:$0xff]
        %v1038 = vld [vmem:[%s675 + $0x150] sm:$0xff]
        %v1039 = vld [vmem:[%s675 + $0x158] sm:$0xff]
        %v1040 = vld [vmem:[%s675 + $0x168] sm:$0xff]
        %v1041 = vld [vmem:[%s675 + $0x170] sm:$0xff]
        %v1042 = vlaneseq
        %v1043 = vshrl.u32 %v1042, 7
        %v1044 = vsub.s32 3, %v1043
        %v1045 = vrot.slane %v708, %v1044
        %v1046 = vmul.f32 %v1010, %v1045
        %v1047 = vmul.f32 %v1011, %v1045
        %v1048 = vmul.f32 %v1012, %v1045
        %v1049 = vmul.f32 %v1013, %v1045
        %v1050 = vmul.f32 %v1014, %v1045
        %v1051 = vmul.f32 %v1015, %v1045
        %v1052 = vmul.f32 %v1016, %v1045
        %v1053 = vmul.f32 %v1017, %v1045
        %v1054 = vmul.f32 %v1018, %v1045
        %v1055 = vmul.f32 %v1019, %v1045
        %v1056 = vmul.f32 %v1020, %v1045
        %v1057 = vmul.f32 %v1021, %v1045
        %v1058 = vmul.f32 %v1022, %v1045
        %v1059 = vmul.f32 %v1023, %v1045
        %v1060 = vmul.f32 %v1024, %v1045
        %v1061 = vmul.f32 %v1025, %v1045
        %v1062 = vmul.f32 %v1026, %v1045
        %v1063 = vmul.f32 %v1027, %v1045
        %v1064 = vmul.f32 %v1028, %v1045
        %v1065 = vmul.f32 %v1029, %v1045
        %v1066 = vmul.f32 %v1030, %v1045
        %v1067 = vmul.f32 %v1031, %v1045
        %v1068 = vmul.f32 %v1032, %v1045
        %v1069 = vmul.f32 %v1033, %v1045
        %v1070 = vmul.f32 %v1034, %v1045
        %v1071 = vmul.f32 %v1035, %v1045
        %v1072 = vmul.f32 %v1036, %v1045
        %v1073 = vmul.f32 %v1037, %v1045
        %v1074 = vmul.f32 %v1038, %v1045
        %v1075 = vmul.f32 %v1039, %v1045
        %v1076 = vmul.f32 %v1040, %v1045
        %v1077 = vmul.f32 %v1041, %v1045
        %v1078 = vadd.f32 %v978, %v1046
        %v1079 = vadd.f32 %v979, %v1047
        %v1080 = vadd.f32 %v980, %v1048
        %v1081 = vadd.f32 %v981, %v1049
        %v1082 = vadd.f32 %v982, %v1050
        %v1083 = vadd.f32 %v983, %v1051
        %v1084 = vadd.f32 %v984, %v1052
        %v1085 = vadd.f32 %v985, %v1053
        %v1086 = vadd.f32 %v986, %v1054
        %v1087 = vadd.f32 %v987, %v1055
        %v1088 = vadd.f32 %v988, %v1056
        %v1089 = vadd.f32 %v989, %v1057
        %v1090 = vadd.f32 %v990, %v1058
        %v1091 = vadd.f32 %v991, %v1059
        %v1092 = vadd.f32 %v992, %v1060
        %v1093 = vadd.f32 %v993, %v1061
        %v1094 = vadd.f32 %v994, %v1062
        %v1095 = vadd.f32 %v995, %v1063
        %v1096 = vadd.f32 %v996, %v1064
        %v1097 = vadd.f32 %v997, %v1065
        %v1098 = vadd.f32 %v998, %v1066
        %v1099 = vadd.f32 %v999, %v1067
        %v1100 = vadd.f32 %v1000, %v1068
        %v1101 = vadd.f32 %v1001, %v1069
        %v1102 = vadd.f32 %v1002, %v1070
        %v1103 = vadd.f32 %v1003, %v1071
        %v1104 = vadd.f32 %v1004, %v1072
        %v1105 = vadd.f32 %v1005, %v1073
        %v1106 = vadd.f32 %v1006, %v1074
        %v1107 = vadd.f32 %v1007, %v1075
        %v1108 = vadd.f32 %v1008, %v1076
        %v1109 = vadd.f32 %v1009, %v1077
        %v1110 = vld [vmem:[%s675 + $0x1] sm:$0xff]
        %v1111 = vld [vmem:[%s675 + $0x9] sm:$0xff]
        %v1112 = vld [vmem:[%s675 + $0x19] sm:$0xff]
        %v1113 = vld [vmem:[%s675 + $0x21] sm:$0xff]
        %v1114 = vld [vmem:[%s675 + $0x31] sm:$0xff]
        %v1115 = vld [vmem:[%s675 + $0x39] sm:$0xff]
        %v1116 = vld [vmem:[%s675 + $0x49] sm:$0xff]
        %v1117 = vld [vmem:[%s675 + $0x51] sm:$0xff]
        %v1118 = vld [vmem:[%s675 + $0x61] sm:$0xff]
        %v1119 = vld [vmem:[%s675 + $0x69] sm:$0xff]
        %v1120 = vld [vmem:[%s675 + $0x79] sm:$0xff]
        %v1121 = vld [vmem:[%s675 + $0x81] sm:$0xff]
        %v1122 = vld [vmem:[%s675 + $0x91] sm:$0xff]
        %v1123 = vld [vmem:[%s675 + $0x99] sm:$0xff]
        %v1124 = vld [vmem:[%s675 + $0xa9] sm:$0xff]
        %v1125 = vld [vmem:[%s675 + $0xb1] sm:$0xff]
        %v1126 = vld [vmem:[%s675 + $0xc1] sm:$0xff]
        %v1127 = vld [vmem:[%s675 + $0xc9] sm:$0xff]
        %v1128 = vld [vmem:[%s675 + $0xd9] sm:$0xff]
        %v1129 = vld [vmem:[%s675 + $0xe1] sm:$0xff]
        %v1130 = vld [vmem:[%s675 + $0xf1] sm:$0xff]
        %v1131 = vld [vmem:[%s675 + $0xf9] sm:$0xff]
        %v1132 = vld [vmem:[%s675 + $0x109] sm:$0xff]
        %v1133 = vld [vmem:[%s675 + $0x111] sm:$0xff]
        %v1134 = vld [vmem:[%s675 + $0x121] sm:$0xff]
        %v1135 = vld [vmem:[%s675 + $0x129] sm:$0xff]
        %v1136 = vld [vmem:[%s675 + $0x139] sm:$0xff]
        %v1137 = vld [vmem:[%s675 + $0x141] sm:$0xff]
        %v1138 = vld [vmem:[%s675 + $0x151] sm:$0xff]
        %v1139 = vld [vmem:[%s675 + $0x159] sm:$0xff]
        %v1140 = vld [vmem:[%s675 + $0x169] sm:$0xff]
        %v1141 = vld [vmem:[%s675 + $0x171] sm:$0xff]
        %v1142 = vlaneseq
        %v1143 = vshrl.u32 %v1142, 7
        %v1144 = vsub.s32 4, %v1143
        %v1145 = vrot.slane %v708, %v1144
        %v1146 = vmul.f32 %v1110, %v1145
        %v1147 = vmul.f32 %v1111, %v1145
        %v1148 = vmul.f32 %v1112, %v1145
        %v1149 = vmul.f32 %v1113, %v1145
        %v1150 = vmul.f32 %v1114, %v1145
        %v1151 = vmul.f32 %v1115, %v1145
        %v1152 = vmul.f32 %v1116, %v1145
        %v1153 = vmul.f32 %v1117, %v1145
        %v1154 = vmul.f32 %v1118, %v1145
        %v1155 = vmul.f32 %v1119, %v1145
        %v1156 = vmul.f32 %v1120, %v1145
        %v1157 = vmul.f32 %v1121, %v1145
        %v1158 = vmul.f32 %v1122, %v1145
        %v1159 = vmul.f32 %v1123, %v1145
        %v1160 = vmul.f32 %v1124, %v1145
        %v1161 = vmul.f32 %v1125, %v1145
        %v1162 = vmul.f32 %v1126, %v1145
        %v1163 = vmul.f32 %v1127, %v1145
        %v1164 = vmul.f32 %v1128, %v1145
        %v1165 = vmul.f32 %v1129, %v1145
        %v1166 = vmul.f32 %v1130, %v1145
        %v1167 = vmul.f32 %v1131, %v1145
        %v1168 = vmul.f32 %v1132, %v1145
        %v1169 = vmul.f32 %v1133, %v1145
        %v1170 = vmul.f32 %v1134, %v1145
        %v1171 = vmul.f32 %v1135, %v1145
        %v1172 = vmul.f32 %v1136, %v1145
        %v1173 = vmul.f32 %v1137, %v1145
        %v1174 = vmul.f32 %v1138, %v1145
        %v1175 = vmul.f32 %v1139, %v1145
        %v1176 = vmul.f32 %v1140, %v1145
        %v1177 = vmul.f32 %v1141, %v1145
        %v1178 = vadd.f32 %v1078, %v1146
        %v1179 = vadd.f32 %v1079, %v1147
        %v1180 = vadd.f32 %v1080, %v1148
        %v1181 = vadd.f32 %v1081, %v1149
        %v1182 = vadd.f32 %v1082, %v1150
        %v1183 = vadd.f32 %v1083, %v1151
        %v1184 = vadd.f32 %v1084, %v1152
        %v1185 = vadd.f32 %v1085, %v1153
        %v1186 = vadd.f32 %v1086, %v1154
        %v1187 = vadd.f32 %v1087, %v1155
        %v1188 = vadd.f32 %v1088, %v1156
        %v1189 = vadd.f32 %v1089, %v1157
        %v1190 = vadd.f32 %v1090, %v1158
        %v1191 = vadd.f32 %v1091, %v1159
        %v1192 = vadd.f32 %v1092, %v1160
        %v1193 = vadd.f32 %v1093, %v1161
        %v1194 = vadd.f32 %v1094, %v1162
        %v1195 = vadd.f32 %v1095, %v1163
        %v1196 = vadd.f32 %v1096, %v1164
        %v1197 = vadd.f32 %v1097, %v1165
        %v1198 = vadd.f32 %v1098, %v1166
        %v1199 = vadd.f32 %v1099, %v1167
        %v1200 = vadd.f32 %v1100, %v1168
        %v1201 = vadd.f32 %v1101, %v1169
        %v1202 = vadd.f32 %v1102, %v1170
        %v1203 = vadd.f32 %v1103, %v1171
        %v1204 = vadd.f32 %v1104, %v1172
        %v1205 = vadd.f32 %v1105, %v1173
        %v1206 = vadd.f32 %v1106, %v1174
        %v1207 = vadd.f32 %v1107, %v1175
        %v1208 = vadd.f32 %v1108, %v1176
        %v1209 = vadd.f32 %v1109, %v1177
        %v1210 = vld [vmem:[%s675 + $0x2] sm:$0xff]
        %v1211 = vld [vmem:[%s675 + $0xa] sm:$0xff]
        %v1212 = vld [vmem:[%s675 + $0x1a] sm:$0xff]
        %v1213 = vld [vmem:[%s675 + $0x22] sm:$0xff]
        %v1214 = vld [vmem:[%s675 + $0x32] sm:$0xff]
        %v1215 = vld [vmem:[%s675 + $0x3a] sm:$0xff]
        %v1216 = vld [vmem:[%s675 + $0x4a] sm:$0xff]
        %v1217 = vld [vmem:[%s675 + $0x52] sm:$0xff]
        %v1218 = vld [vmem:[%s675 + $0x62] sm:$0xff]
        %v1219 = vld [vmem:[%s675 + $0x6a] sm:$0xff]
        %v1220 = vld [vmem:[%s675 + $0x7a] sm:$0xff]
        %v1221 = vld [vmem:[%s675 + $0x82] sm:$0xff]
        %v1222 = vld [vmem:[%s675 + $0x92] sm:$0xff]
        %v1223 = vld [vmem:[%s675 + $0x9a] sm:$0xff]
        %v1224 = vld [vmem:[%s675 + $0xaa] sm:$0xff]
        %v1225 = vld [vmem:[%s675 + $0xb2] sm:$0xff]
        %v1226 = vld [vmem:[%s675 + $0xc2] sm:$0xff]
        %v1227 = vld [vmem:[%s675 + $0xca] sm:$0xff]
        %v1228 = vld [vmem:[%s675 + $0xda] sm:$0xff]
        %v1229 = vld [vmem:[%s675 + $0xe2] sm:$0xff]
        %v1230 = vld [vmem:[%s675 + $0xf2] sm:$0xff]
        %v1231 = vld [vmem:[%s675 + $0xfa] sm:$0xff]
        %v1232 = vld [vmem:[%s675 + $0x10a] sm:$0xff]
        %v1233 = vld [vmem:[%s675 + $0x112] sm:$0xff]
        %v1234 = vld [vmem:[%s675 + $0x122] sm:$0xff]
        %v1235 = vld [vmem:[%s675 + $0x12a] sm:$0xff]
        %v1236 = vld [vmem:[%s675 + $0x13a] sm:$0xff]
        %v1237 = vld [vmem:[%s675 + $0x142] sm:$0xff]
        %v1238 = vld [vmem:[%s675 + $0x152] sm:$0xff]
        %v1239 = vld [vmem:[%s675 + $0x15a] sm:$0xff]
        %v1240 = vld [vmem:[%s675 + $0x16a] sm:$0xff]
        %v1241 = vld [vmem:[%s675 + $0x172] sm:$0xff]
        %v1242 = vlaneseq
        %v1243 = vshrl.u32 %v1242, 7
        %v1244 = vsub.s32 5, %v1243
        %v1245 = vrot.slane %v708, %v1244
        %v1246 = vmul.f32 %v1210, %v1245
        %v1247 = vmul.f32 %v1211, %v1245
        %v1248 = vmul.f32 %v1212, %v1245
        %v1249 = vmul.f32 %v1213, %v1245
        %v1250 = vmul.f32 %v1214, %v1245
        %v1251 = vmul.f32 %v1215, %v1245
        %v1252 = vmul.f32 %v1216, %v1245
        %v1253 = vmul.f32 %v1217, %v1245
        %v1254 = vmul.f32 %v1218, %v1245
        %v1255 = vmul.f32 %v1219, %v1245
        %v1256 = vmul.f32 %v1220, %v1245
        %v1257 = vmul.f32 %v1221, %v1245
        %v1258 = vmul.f32 %v1222, %v1245
        %v1259 = vmul.f32 %v1223, %v1245
        %v1260 = vmul.f32 %v1224, %v1245
        %v1261 = vmul.f32 %v1225, %v1245
        %v1262 = vmul.f32 %v1226, %v1245
        %v1263 = vmul.f32 %v1227, %v1245
        %v1264 = vmul.f32 %v1228, %v1245
        %v1265 = vmul.f32 %v1229, %v1245
        %v1266 = vmul.f32 %v1230, %v1245
        %v1267 = vmul.f32 %v1231, %v1245
        %v1268 = vmul.f32 %v1232, %v1245
        %v1269 = vmul.f32 %v1233, %v1245
        %v1270 = vmul.f32 %v1234, %v1245
        %v1271 = vmul.f32 %v1235, %v1245
        %v1272 = vmul.f32 %v1236, %v1245
        %v1273 = vmul.f32 %v1237, %v1245
        %v1274 = vmul.f32 %v1238, %v1245
        %v1275 = vmul.f32 %v1239, %v1245
        %v1276 = vmul.f32 %v1240, %v1245
        %v1277 = vmul.f32 %v1241, %v1245
        %v1278 = vadd.f32 %v1178, %v1246
        %v1279 = vadd.f32 %v1179, %v1247
        %v1280 = vadd.f32 %v1180, %v1248
        %v1281 = vadd.f32 %v1181, %v1249
        %v1282 = vadd.f32 %v1182, %v1250
        %v1283 = vadd.f32 %v1183, %v1251
        %v1284 = vadd.f32 %v1184, %v1252
        %v1285 = vadd.f32 %v1185, %v1253
        %v1286 = vadd.f32 %v1186, %v1254
        %v1287 = vadd.f32 %v1187, %v1255
        %v1288 = vadd.f32 %v1188, %v1256
        %v1289 = vadd.f32 %v1189, %v1257
        %v1290 = vadd.f32 %v1190, %v1258
        %v1291 = vadd.f32 %v1191, %v1259
        %v1292 = vadd.f32 %v1192, %v1260
        %v1293 = vadd.f32 %v1193, %v1261
        %v1294 = vadd.f32 %v1194, %v1262
        %v1295 = vadd.f32 %v1195, %v1263
        %v1296 = vadd.f32 %v1196, %v1264
        %v1297 = vadd.f32 %v1197, %v1265
        %v1298 = vadd.f32 %v1198, %v1266
        %v1299 = vadd.f32 %v1199, %v1267
        %v1300 = vadd.f32 %v1200, %v1268
        %v1301 = vadd.f32 %v1201, %v1269
        %v1302 = vadd.f32 %v1202, %v1270
        %v1303 = vadd.f32 %v1203, %v1271
        %v1304 = vadd.f32 %v1204, %v1272
        %v1305 = vadd.f32 %v1205, %v1273
        %v1306 = vadd.f32 %v1206, %v1274
        %v1307 = vadd.f32 %v1207, %v1275
        %v1308 = vadd.f32 %v1208, %v1276
        %v1309 = vadd.f32 %v1209, %v1277
        %s1310 = scalar_lea.vmem [#allocation2], 48
        %v1311 = vld [vmem:[%s1310] sm:$0xff]
        %v1312 = vld [vmem:[%s1310 + $0x8] sm:$0xff]
        %v1313 = vld [vmem:[%s1310 + $0x18] sm:$0xff]
        %v1314 = vld [vmem:[%s1310 + $0x20] sm:$0xff]
        %v1315 = vld [vmem:[%s1310 + $0x30] sm:$0xff]
        %v1316 = vld [vmem:[%s1310 + $0x38] sm:$0xff]
        %v1317 = vld [vmem:[%s1310 + $0x48] sm:$0xff]
        %v1318 = vld [vmem:[%s1310 + $0x50] sm:$0xff]
        %v1319 = vld [vmem:[%s1310 + $0x60] sm:$0xff]
        %v1320 = vld [vmem:[%s1310 + $0x68] sm:$0xff]
        %v1321 = vld [vmem:[%s1310 + $0x78] sm:$0xff]
        %v1322 = vld [vmem:[%s1310 + $0x80] sm:$0xff]
        %v1323 = vld [vmem:[%s1310 + $0x90] sm:$0xff]
        %v1324 = vld [vmem:[%s1310 + $0x98] sm:$0xff]
        %v1325 = vld [vmem:[%s1310 + $0xa8] sm:$0xff]
        %v1326 = vld [vmem:[%s1310 + $0xb0] sm:$0xff]
        %v1327 = vld [vmem:[%s1310 + $0xc0] sm:$0xff]
        %v1328 = vld [vmem:[%s1310 + $0xc8] sm:$0xff]
        %v1329 = vld [vmem:[%s1310 + $0xd8] sm:$0xff]
        %v1330 = vld [vmem:[%s1310 + $0xe0] sm:$0xff]
        %v1331 = vld [vmem:[%s1310 + $0xf0] sm:$0xff]
        %v1332 = vld [vmem:[%s1310 + $0xf8] sm:$0xff]
        %v1333 = vld [vmem:[%s1310 + $0x108] sm:$0xff]
        %v1334 = vld [vmem:[%s1310 + $0x110] sm:$0xff]
        %v1335 = vld [vmem:[%s1310 + $0x120] sm:$0xff]
        %v1336 = vld [vmem:[%s1310 + $0x128] sm:$0xff]
        %v1337 = vld [vmem:[%s1310 + $0x138] sm:$0xff]
        %v1338 = vld [vmem:[%s1310 + $0x140] sm:$0xff]
        %v1339 = vld [vmem:[%s1310 + $0x150] sm:$0xff]
        %v1340 = vld [vmem:[%s1310 + $0x158] sm:$0xff]
        %v1341 = vld [vmem:[%s1310 + $0x168] sm:$0xff]
        %v1342 = vld [vmem:[%s1310 + $0x170] sm:$0xff]
        %v1343 = vlaneseq
        %v1344 = vshrl.u32 %v1343, 7
        %v1345 = vsub.s32 6, %v1344
        %v1346 = vrot.slane %v708, %v1345
        %v1347 = vmul.f32 %v1311, %v1346
        %v1348 = vmul.f32 %v1312, %v1346
        %v1349 = vmul.f32 %v1313, %v1346
        %v1350 = vmul.f32 %v1314, %v1346
        %v1351 = vmul.f32 %v1315, %v1346
        %v1352 = vmul.f32 %v1316, %v1346
        %v1353 = vmul.f32 %v1317, %v1346
        %v1354 = vmul.f32 %v1318, %v1346
        %v1355 = vmul.f32 %v1319, %v1346
        %v1356 = vmul.f32 %v1320, %v1346
        %v1357 = vmul.f32 %v1321, %v1346
        %v1358 = vmul.f32 %v1322, %v1346
        %v1359 = vmul.f32 %v1323, %v1346
        %v1360 = vmul.f32 %v1324, %v1346
        %v1361 = vmul.f32 %v1325, %v1346
        %v1362 = vmul.f32 %v1326, %v1346
        %v1363 = vmul.f32 %v1327, %v1346
        %v1364 = vmul.f32 %v1328, %v1346
        %v1365 = vmul.f32 %v1329, %v1346
        %v1366 = vmul.f32 %v1330, %v1346
        %v1367 = vmul.f32 %v1331, %v1346
        %v1368 = vmul.f32 %v1332, %v1346
        %v1369 = vmul.f32 %v1333, %v1346
        %v1370 = vmul.f32 %v1334, %v1346
        %v1371 = vmul.f32 %v1335, %v1346
        %v1372 = vmul.f32 %v1336, %v1346
        %v1373 = vmul.f32 %v1337, %v1346
        %v1374 = vmul.f32 %v1338, %v1346
        %v1375 = vmul.f32 %v1339, %v1346
        %v1376 = vmul.f32 %v1340, %v1346
        %v1377 = vmul.f32 %v1341, %v1346
        %v1378 = vmul.f32 %v1342, %v1346
        %v1379 = vadd.f32 %v1278, %v1347
        %v1380 = vadd.f32 %v1279, %v1348
        %v1381 = vadd.f32 %v1280, %v1349
        %v1382 = vadd.f32 %v1281, %v1350
        %v1383 = vadd.f32 %v1282, %v1351
        %v1384 = vadd.f32 %v1283, %v1352
        %v1385 = vadd.f32 %v1284, %v1353
        %v1386 = vadd.f32 %v1285, %v1354
        %v1387 = vadd.f32 %v1286, %v1355
        %v1388 = vadd.f32 %v1287, %v1356
        %v1389 = vadd.f32 %v1288, %v1357
        %v1390 = vadd.f32 %v1289, %v1358
        %v1391 = vadd.f32 %v1290, %v1359
        %v1392 = vadd.f32 %v1291, %v1360
        %v1393 = vadd.f32 %v1292, %v1361
        %v1394 = vadd.f32 %v1293, %v1362
        %v1395 = vadd.f32 %v1294, %v1363
        %v1396 = vadd.f32 %v1295, %v1364
        %v1397 = vadd.f32 %v1296, %v1365
        %v1398 = vadd.f32 %v1297, %v1366
        %v1399 = vadd.f32 %v1298, %v1367
        %v1400 = vadd.f32 %v1299, %v1368
        %v1401 = vadd.f32 %v1300, %v1369
        %v1402 = vadd.f32 %v1301, %v1370
        %v1403 = vadd.f32 %v1302, %v1371
        %v1404 = vadd.f32 %v1303, %v1372
        %v1405 = vadd.f32 %v1304, %v1373
        %v1406 = vadd.f32 %v1305, %v1374
        %v1407 = vadd.f32 %v1306, %v1375
        %v1408 = vadd.f32 %v1307, %v1376
        %v1409 = vadd.f32 %v1308, %v1377
        %v1410 = vadd.f32 %v1309, %v1378
        %v1411 = vld [vmem:[%s1310 + $0x1] sm:$0xff]
        %v1412 = vld [vmem:[%s1310 + $0x9] sm:$0xff]
        %v1413 = vld [vmem:[%s1310 + $0x19] sm:$0xff]
        %v1414 = vld [vmem:[%s1310 + $0x21] sm:$0xff]
        %v1415 = vld [vmem:[%s1310 + $0x31] sm:$0xff]
        %v1416 = vld [vmem:[%s1310 + $0x39] sm:$0xff]
        %v1417 = vld [vmem:[%s1310 + $0x49] sm:$0xff]
        %v1418 = vld [vmem:[%s1310 + $0x51] sm:$0xff]
        %v1419 = vld [vmem:[%s1310 + $0x61] sm:$0xff]
        %v1420 = vld [vmem:[%s1310 + $0x69] sm:$0xff]
        %v1421 = vld [vmem:[%s1310 + $0x79] sm:$0xff]
        %v1422 = vld [vmem:[%s1310 + $0x81] sm:$0xff]
        %v1423 = vld [vmem:[%s1310 + $0x91] sm:$0xff]
        %v1424 = vld [vmem:[%s1310 + $0x99] sm:$0xff]
        %v1425 = vld [vmem:[%s1310 + $0xa9] sm:$0xff]
        %v1426 = vld [vmem:[%s1310 + $0xb1] sm:$0xff]
        %v1427 = vld [vmem:[%s1310 + $0xc1] sm:$0xff]
        %v1428 = vld [vmem:[%s1310 + $0xc9] sm:$0xff]
        %v1429 = vld [vmem:[%s1310 + $0xd9] sm:$0xff]
        %v1430 = vld [vmem:[%s1310 + $0xe1] sm:$0xff]
        %v1431 = vld [vmem:[%s1310 + $0xf1] sm:$0xff]
        %v1432 = vld [vmem:[%s1310 + $0xf9] sm:$0xff]
        %v1433 = vld [vmem:[%s1310 + $0x109] sm:$0xff]
        %v1434 = vld [vmem:[%s1310 + $0x111] sm:$0xff]
        %v1435 = vld [vmem:[%s1310 + $0x121] sm:$0xff]
        %v1436 = vld [vmem:[%s1310 + $0x129] sm:$0xff]
        %v1437 = vld [vmem:[%s1310 + $0x139] sm:$0xff]
        %v1438 = vld [vmem:[%s1310 + $0x141] sm:$0xff]
        %v1439 = vld [vmem:[%s1310 + $0x151] sm:$0xff]
        %v1440 = vld [vmem:[%s1310 + $0x159] sm:$0xff]
        %v1441 = vld [vmem:[%s1310 + $0x169] sm:$0xff]
        %v1442 = vld [vmem:[%s1310 + $0x171] sm:$0xff]
        %v1443 = vlaneseq
        %v1444 = vshrl.u32 %v1443, 7
        %v1445 = vsub.s32 7, %v1444
        %v1446 = vrot.slane %v708, %v1445
        %v1447 = vmul.f32 %v1411, %v1446
        %v1448 = vmul.f32 %v1412, %v1446
        %v1449 = vmul.f32 %v1413, %v1446
        %v1450 = vmul.f32 %v1414, %v1446
        %v1451 = vmul.f32 %v1415, %v1446
        %v1452 = vmul.f32 %v1416, %v1446
        %v1453 = vmul.f32 %v1417, %v1446
        %v1454 = vmul.f32 %v1418, %v1446
        %v1455 = vmul.f32 %v1419, %v1446
        %v1456 = vmul.f32 %v1420, %v1446
        %v1457 = vmul.f32 %v1421, %v1446
        %v1458 = vmul.f32 %v1422, %v1446
        %v1459 = vmul.f32 %v1423, %v1446
        %v1460 = vmul.f32 %v1424, %v1446
        %v1461 = vmul.f32 %v1425, %v1446
        %v1462 = vmul.f32 %v1426, %v1446
        %v1463 = vmul.f32 %v1427, %v1446
        %v1464 = vmul.f32 %v1428, %v1446
        %v1465 = vmul.f32 %v1429, %v1446
        %v1466 = vmul.f32 %v1430, %v1446
        %v1467 = vmul.f32 %v1431, %v1446
        %v1468 = vmul.f32 %v1432, %v1446
        %v1469 = vmul.f32 %v1433, %v1446
        %v1470 = vmul.f32 %v1434, %v1446
        %v1471 = vmul.f32 %v1435, %v1446
        %v1472 = vmul.f32 %v1436, %v1446
        %v1473 = vmul.f32 %v1437, %v1446
        %v1474 = vmul.f32 %v1438, %v1446
        %v1475 = vmul.f32 %v1439, %v1446
        %v1476 = vmul.f32 %v1440, %v1446
        %v1477 = vmul.f32 %v1441, %v1446
        %v1478 = vmul.f32 %v1442, %v1446
        %v1479 = vadd.f32 %v1379, %v1447
        %v1480 = vadd.f32 %v1380, %v1448
        %v1481 = vadd.f32 %v1381, %v1449
        %v1482 = vadd.f32 %v1382, %v1450
        %v1483 = vadd.f32 %v1383, %v1451
        %v1484 = vadd.f32 %v1384, %v1452
        %v1485 = vadd.f32 %v1385, %v1453
        %v1486 = vadd.f32 %v1386, %v1454
        %v1487 = vadd.f32 %v1387, %v1455
        %v1488 = vadd.f32 %v1388, %v1456
        %v1489 = vadd.f32 %v1389, %v1457
        %v1490 = vadd.f32 %v1390, %v1458
        %v1491 = vadd.f32 %v1391, %v1459
        %v1492 = vadd.f32 %v1392, %v1460
        %v1493 = vadd.f32 %v1393, %v1461
        %v1494 = vadd.f32 %v1394, %v1462
        %v1495 = vadd.f32 %v1395, %v1463
        %v1496 = vadd.f32 %v1396, %v1464
        %v1497 = vadd.f32 %v1397, %v1465
        %v1498 = vadd.f32 %v1398, %v1466
        %v1499 = vadd.f32 %v1399, %v1467
        %v1500 = vadd.f32 %v1400, %v1468
        %v1501 = vadd.f32 %v1401, %v1469
        %v1502 = vadd.f32 %v1402, %v1470
        %v1503 = vadd.f32 %v1403, %v1471
        %v1504 = vadd.f32 %v1404, %v1472
        %v1505 = vadd.f32 %v1405, %v1473
        %v1506 = vadd.f32 %v1406, %v1474
        %v1507 = vadd.f32 %v1407, %v1475
        %v1508 = vadd.f32 %v1408, %v1476
        %v1509 = vadd.f32 %v1409, %v1477
        %v1510 = vadd.f32 %v1410, %v1478
        %v1511 = vld [vmem:[%s1310 + $0x2] sm:$0xff]
        %v1512 = vld [vmem:[%s1310 + $0xa] sm:$0xff]
        %v1513 = vld [vmem:[%s1310 + $0x1a] sm:$0xff]
        %v1514 = vld [vmem:[%s1310 + $0x22] sm:$0xff]
        %v1515 = vld [vmem:[%s1310 + $0x32] sm:$0xff]
        %v1516 = vld [vmem:[%s1310 + $0x3a] sm:$0xff]
        %v1517 = vld [vmem:[%s1310 + $0x4a] sm:$0xff]
        %v1518 = vld [vmem:[%s1310 + $0x52] sm:$0xff]
        %v1519 = vld [vmem:[%s1310 + $0x62] sm:$0xff]
        %v1520 = vld [vmem:[%s1310 + $0x6a] sm:$0xff]
        %v1521 = vld [vmem:[%s1310 + $0x7a] sm:$0xff]
        %v1522 = vld [vmem:[%s1310 + $0x82] sm:$0xff]
        %v1523 = vld [vmem:[%s1310 + $0x92] sm:$0xff]
        %v1524 = vld [vmem:[%s1310 + $0x9a] sm:$0xff]
        %v1525 = vld [vmem:[%s1310 + $0xaa] sm:$0xff]
        %v1526 = vld [vmem:[%s1310 + $0xb2] sm:$0xff]
        %v1527 = vld [vmem:[%s1310 + $0xc2] sm:$0xff]
        %v1528 = vld [vmem:[%s1310 + $0xca] sm:$0xff]
        %v1529 = vld [vmem:[%s1310 + $0xda] sm:$0xff]
        %v1530 = vld [vmem:[%s1310 + $0xe2] sm:$0xff]
        %v1531 = vld [vmem:[%s1310 + $0xf2] sm:$0xff]
        %v1532 = vld [vmem:[%s1310 + $0xfa] sm:$0xff]
        %v1533 = vld [vmem:[%s1310 + $0x10a] sm:$0xff]
        %v1534 = vld [vmem:[%s1310 + $0x112] sm:$0xff]
        %v1535 = vld [vmem:[%s1310 + $0x122] sm:$0xff]
        %v1536 = vld [vmem:[%s1310 + $0x12a] sm:$0xff]
        %v1537 = vld [vmem:[%s1310 + $0x13a] sm:$0xff]
        %v1538 = vld [vmem:[%s1310 + $0x142] sm:$0xff]
        %v1539 = vld [vmem:[%s1310 + $0x152] sm:$0xff]
        %v1540 = vld [vmem:[%s1310 + $0x15a] sm:$0xff]
        %v1541 = vld [vmem:[%s1310 + $0x16a] sm:$0xff]
        %v1542 = vld [vmem:[%s1310 + $0x172] sm:$0xff]
        %v1543 = vlaneseq
        %v1544 = vshrl.u32 %v1543, 7
        %v1545 = vsub.s32 0, %v1544
        %v1546 = vrot.slane %v709, %v1545
        %v1547 = vmul.f32 %v1511, %v1546
        %v1548 = vmul.f32 %v1512, %v1546
        %v1549 = vmul.f32 %v1513, %v1546
        %v1550 = vmul.f32 %v1514, %v1546
        %v1551 = vmul.f32 %v1515, %v1546
        %v1552 = vmul.f32 %v1516, %v1546
        %v1553 = vmul.f32 %v1517, %v1546
        %v1554 = vmul.f32 %v1518, %v1546
        %v1555 = vmul.f32 %v1519, %v1546
        %v1556 = vmul.f32 %v1520, %v1546
        %v1557 = vmul.f32 %v1521, %v1546
        %v1558 = vmul.f32 %v1522, %v1546
        %v1559 = vmul.f32 %v1523, %v1546
        %v1560 = vmul.f32 %v1524, %v1546
        %v1561 = vmul.f32 %v1525, %v1546
        %v1562 = vmul.f32 %v1526, %v1546
        %v1563 = vmul.f32 %v1527, %v1546
        %v1564 = vmul.f32 %v1528, %v1546
        %v1565 = vmul.f32 %v1529, %v1546
        %v1566 = vmul.f32 %v1530, %v1546
        %v1567 = vmul.f32 %v1531, %v1546
        %v1568 = vmul.f32 %v1532, %v1546
        %v1569 = vmul.f32 %v1533, %v1546
        %v1570 = vmul.f32 %v1534, %v1546
        %v1571 = vmul.f32 %v1535, %v1546
        %v1572 = vmul.f32 %v1536, %v1546
        %v1573 = vmul.f32 %v1537, %v1546
        %v1574 = vmul.f32 %v1538, %v1546
        %v1575 = vmul.f32 %v1539, %v1546
        %v1576 = vmul.f32 %v1540, %v1546
        %v1577 = vmul.f32 %v1541, %v1546
        %v1578 = vmul.f32 %v1542, %v1546
        %v1579 = vadd.f32 %v1479, %v1547
        %v1580 = vadd.f32 %v1480, %v1548
        %v1581 = vadd.f32 %v1481, %v1549
        %v1582 = vadd.f32 %v1482, %v1550
        %v1583 = vadd.f32 %v1483, %v1551
        %v1584 = vadd.f32 %v1484, %v1552
        %v1585 = vadd.f32 %v1485, %v1553
        %v1586 = vadd.f32 %v1486, %v1554
        %v1587 = vadd.f32 %v1487, %v1555
        %v1588 = vadd.f32 %v1488, %v1556
        %v1589 = vadd.f32 %v1489, %v1557
        %v1590 = vadd.f32 %v1490, %v1558
        %v1591 = vadd.f32 %v1491, %v1559
        %v1592 = vadd.f32 %v1492, %v1560
        %v1593 = vadd.f32 %v1493, %v1561
        %v1594 = vadd.f32 %v1494, %v1562
        %v1595 = vadd.f32 %v1495, %v1563
        %v1596 = vadd.f32 %v1496, %v1564
        %v1597 = vadd.f32 %v1497, %v1565
        %v1598 = vadd.f32 %v1498, %v1566
        %v1599 = vadd.f32 %v1499, %v1567
        %v1600 = vadd.f32 %v1500, %v1568
        %v1601 = vadd.f32 %v1501, %v1569
        %v1602 = vadd.f32 %v1502, %v1570
        %v1603 = vadd.f32 %v1503, %v1571
        %v1604 = vadd.f32 %v1504, %v1572
        %v1605 = vadd.f32 %v1505, %v1573
        %v1606 = vadd.f32 %v1506, %v1574
        %v1607 = vadd.f32 %v1507, %v1575
        %v1608 = vadd.f32 %v1508, %v1576
        %v1609 = vadd.f32 %v1509, %v1577
        %v1610 = vadd.f32 %v1510, %v1578
        %v1611 = vld [vmem:[%s4] sm:$0x1]
        %v1613 = vlaneseq
        %v1614 = vshrl.u32 %v1613, 7
        %v1615 = vsub.s32 0, %v1614
        %v1616 = vrot.slane %v1611, %v1615
        %v1618 = vadd.f32 %v1579, %v1616
        %v1619 = vadd.f32 %v1580, %v1616
        %v1620 = vadd.f32 %v1581, %v1616
        %v1621 = vadd.f32 %v1582, %v1616
        %v1622 = vadd.f32 %v1583, %v1616
        %v1623 = vadd.f32 %v1584, %v1616
        %v1624 = vadd.f32 %v1585, %v1616
        %v1625 = vadd.f32 %v1586, %v1616
        %v1626 = vadd.f32 %v1587, %v1616
        %v1627 = vadd.f32 %v1588, %v1616
        %v1628 = vadd.f32 %v1589, %v1616
        %v1629 = vadd.f32 %v1590, %v1616
        %v1630 = vadd.f32 %v1591, %v1616
        %v1631 = vadd.f32 %v1592, %v1616
        %v1632 = vadd.f32 %v1593, %v1616
        %v1633 = vadd.f32 %v1594, %v1616
        %v1634 = vadd.f32 %v1595, %v1616
        %v1635 = vadd.f32 %v1596, %v1616
        %v1636 = vadd.f32 %v1597, %v1616
        %v1637 = vadd.f32 %v1598, %v1616
        %v1638 = vadd.f32 %v1599, %v1616
        %v1639 = vadd.f32 %v1600, %v1616
        %v1640 = vadd.f32 %v1601, %v1616
        %v1641 = vadd.f32 %v1602, %v1616
        %v1642 = vadd.f32 %v1603, %v1616
        %v1643 = vadd.f32 %v1604, %v1616
        %v1644 = vadd.f32 %v1605, %v1616
        %v1645 = vadd.f32 %v1606, %v1616
        %v1646 = vadd.f32 %v1607, %v1616
        %v1647 = vadd.f32 %v1608, %v1616
        %v1648 = vadd.f32 %v1609, %v1616
        %v1649 = vadd.f32 %v1610, %v1616
        %v1650 = vld [vmem:[#allocation9] sm:$0xff]
        %v1651 = vld [vmem:[#allocation9 + $0x8] sm:$0xff]
        %v1652 = vld [vmem:[#allocation9 + $0x10] sm:$0xff]
        %v1653 = vld [vmem:[#allocation9 + $0x18] sm:$0xff]
        %v1654 = vld [vmem:[#allocation9 + $0x20] sm:$0xff]
        %v1655 = vld [vmem:[#allocation9 + $0x28] sm:$0xff]
        %v1656 = vld [vmem:[#allocation9 + $0x30] sm:$0xff]
        %v1657 = vld [vmem:[#allocation9 + $0x38] sm:$0xff]
        %v1658 = vld [vmem:[#allocation9 + $0x40] sm:$0xff]
        %v1659 = vld [vmem:[#allocation9 + $0x48] sm:$0xff]
        %v1660 = vld [vmem:[#allocation9 + $0x50] sm:$0xff]
        %v1661 = vld [vmem:[#allocation9 + $0x58] sm:$0xff]
        %v1662 = vld [vmem:[#allocation9 + $0x60] sm:$0xff]
        %v1663 = vld [vmem:[#allocation9 + $0x68] sm:$0xff]
        %v1664 = vld [vmem:[#allocation9 + $0x70] sm:$0xff]
        %v1665 = vld [vmem:[#allocation9 + $0x78] sm:$0xff]
        %v1666 = vld [vmem:[%s6] sm:$0x1]
        %v1668 = vlaneseq
        %v1669 = vshrl.u32 %v1668, 7
        %v1670 = vsub.s32 0, %v1669
        %v1671 = vrot.slane %v1666, %v1670
        %1673 = vmatprep.subr.mxu0 0.0
        %1674 = vmatpush1.msra.mxu0 %v1650
        %1675 = vmatprep.subr.mxu0 0.0
        %1676 = vmatpush1.msra.mxu0 %v1651
        %1677 = vmatprep.subr.mxu0 0.0
        %1678 = vmatpush1.msra.mxu0 %v1652
        %1679 = vmatprep.subr.mxu0 0.0
        %1680 = vmatpush1.msra.mxu0 %v1653
        %1681 = vmatprep.subr.mxu0 0.0
        %1682 = vmatpush1.msra.mxu0 %v1654
        %1683 = vmatprep.subr.mxu0 0.0
        %1684 = vmatpush1.msra.mxu0 %v1655
        %1685 = vmatprep.subr.mxu0 0.0
        %1686 = vmatpush1.msra.mxu0 %v1656
        %1687 = vmatprep.subr.mxu0 0.0
        %1688 = vmatpush1.msra.mxu0 %v1657
        %1689 = vmatprep.subr.mxu0 0.0
        %1690 = vmatpush1.msra.mxu0 %v1658
        %1691 = vmatprep.subr.mxu0 0.0
        %1692 = vmatpush1.msra.mxu0 %v1659
        %1693 = vmatprep.subr.mxu0 0.0
        %1694 = vmatpush1.msra.mxu0 %v1660
        %1695 = vmatprep.subr.mxu0 0.0
        %1696 = vmatpush1.msra.mxu0 %v1661
        %1697 = vmatprep.subr.mxu0 0.0
        %1698 = vmatpush1.msra.mxu0 %v1662
        %1699 = vmatprep.subr.mxu0 0.0
        %1700 = vmatpush1.msra.mxu0 %v1663
        %1701 = vmatprep.subr.mxu0 0.0
        %1702 = vmatpush1.msra.mxu0 %v1664
        %1703 = vmatprep.subr.mxu0 0.0
        %1704 = vmatpush1.msra.mxu0 %v1665
        %1705 = vmatprep.subr.mxu0 0.0
        %1706 = vmatpush1.msra.mxu0 0.0
        %1707 = vmatprep.subr.mxu0 0.0
        %1708 = vmatpush1.msra.mxu0 0.0
        %1709 = vmatprep.subr.mxu0 0.0
        %1710 = vmatpush1.msra.mxu0 0.0
        %1711 = vmatprep.subr.mxu0 0.0
        %1712 = vmatpush1.msra.mxu0 0.0
        %1713 = vmatprep.subr.mxu0 0.0
        %1714 = vmatpush1.msra.mxu0 0.0
        %1715 = vmatprep.subr.mxu0 0.0
        %1716 = vmatpush1.msra.mxu0 0.0
        %1717 = vmatprep.subr.mxu0 0.0
        %1718 = vmatpush1.msra.mxu0 0.0
        %1719 = vmatprep.subr.mxu0 0.0
        %1720 = vmatpush1.msra.mxu0 0.0
        %1721 = vmatprep.subr.mxu0 0.0
        %1722 = vmatpush1.msra.mxu0 0.0
        %1723 = vmatprep.subr.mxu0 0.0
        %1724 = vmatpush1.msra.mxu0 0.0
        %1725 = vmatprep.subr.mxu0 0.0
        %1726 = vmatpush1.msra.mxu0 0.0
        %1727 = vmatprep.subr.mxu0 0.0
        %1728 = vmatpush1.msra.mxu0 0.0
        %1729 = vmatprep.subr.mxu0 0.0
        %1730 = vmatpush1.msra.mxu0 0.0
        %1731 = vmatprep.subr.mxu0 0.0
        %1732 = vmatpush1.msra.mxu0 0.0
        %1733 = vmatprep.subr.mxu0 0.0
        %1734 = vmatpush1.msra.mxu0 0.0
        %1735 = vmatprep.subr.mxu0 0.0
        %1736 = vmatpush1.msra.mxu0 0.0
        %1737 = vmatprep.mubr.f32.mxu0 0.0
        %1738 = vmatmul.mubr.f32.gmra.mrb[0].mxu0 %v1618
        %v1739 = vpop.f32.mrb[0].mxu0
        %v1740 = vadd.f32 %v1671, %v1739
        %v1741 = vpop.f32.mrb[0].mxu0
        %1742 = vmatprep.mubr.f32.mxu0 0.0
        %1743 = vmatmul.mubr.f32.gmra.mrb[0].mxu0 %v1619
        %v1744 = vpop.f32.mrb[0].mxu0
        %v1745 = vadd.f32 %v1671, %v1744
        %v1746 = vpop.f32.mrb[0].mxu0
        %1747 = vmatprep.mubr.f32.mxu0 0.0
        %1748 = vmatmul.mubr.f32.gmra.mrb[0].mxu0 %v1620
        %v1749 = vpop.f32.mrb[0].mxu0
        %v1750 = vadd.f32 %v1671, %v1749
        %v1751 = vpop.f32.mrb[0].mxu0
        %1752 = vmatprep.mubr.f32.mxu0 0.0
        %1753 = vmatmul.mubr.f32.gmra.mrb[0].mxu0 %v1621
        %v1754 = vpop.f32.mrb[0].mxu0
        %v1755 = vadd.f32 %v1671, %v1754
        %v1756 = vpop.f32.mrb[0].mxu0
        %1757 = vmatprep.mubr.f32.mxu0 0.0
        %1758 = vmatmul.mubr.f32.gmra.mrb[0].mxu0 %v1622
        %v1759 = vpop.f32.mrb[0].mxu0
        %v1760 = vadd.f32 %v1671, %v1759
        %v1761 = vpop.f32.mrb[0].mxu0
        %1762 = vmatprep.mubr.f32.mxu0 0.0
        %1763 = vmatmul.mubr.f32.gmra.mrb[0].mxu0 %v1623
        %v1764 = vpop.f32.mrb[0].mxu0
        %v1765 = vadd.f32 %v1671, %v1764
        %v1766 = vpop.f32.mrb[0].mxu0
        %1767 = vmatprep.mubr.f32.mxu0 0.0
        %1768 = vmatmul.mubr.f32.gmra.mrb[0].mxu0 %v1624
        %v1769 = vpop.f32.mrb[0].mxu0
        %v1770 = vadd.f32 %v1671, %v1769
        %v1771 = vpop.f32.mrb[0].mxu0
        %1772 = vmatprep.mubr.f32.mxu0 0.0
        %1773 = vmatmul.mubr.f32.gmra.mrb[0].mxu0 %v1625
        %v1774 = vpop.f32.mrb[0].mxu0
        %v1775 = vadd.f32 %v1671, %v1774
        %v1776 = vpop.f32.mrb[0].mxu0
        %1777 = vmatprep.mubr.f32.mxu0 0.0
        %1778 = vmatmul.mubr.f32.gmra.mrb[0].mxu0 %v1626
        %v1779 = vpop.f32.mrb[0].mxu0
        %v1780 = vadd.f32 %v1671, %v1779
        %v1781 = vpop.f32.mrb[0].mxu0
        %1782 = vmatprep.mubr.f32.mxu0 0.0
        %1783 = vmatmul.mubr.f32.gmra.mrb[0].mxu0 %v1627
        %v1784 = vpop.f32.mrb[0].mxu0
        %v1785 = vadd.f32 %v1671, %v1784
        %v1786 = vpop.f32.mrb[0].mxu0
        %1787 = vmatprep.mubr.f32.mxu0 0.0
        %1788 = vmatmul.mubr.f32.gmra.mrb[0].mxu0 %v1628
        %v1789 = vpop.f32.mrb[0].mxu0
        %v1790 = vadd.f32 %v1671, %v1789
        %v1791 = vpop.f32.mrb[0].mxu0
        %1792 = vmatprep.mubr.f32.mxu0 0.0
        %1793 = vmatmul.mubr.f32.gmra.mrb[0].mxu0 %v1629
        %v1794 = vpop.f32.mrb[0].mxu0
        %v1795 = vadd.f32 %v1671, %v1794
        %v1796 = vpop.f32.mrb[0].mxu0
        %1797 = vmatprep.mubr.f32.mxu0 0.0
        %1798 = vmatmul.mubr.f32.gmra.mrb[0].mxu0 %v1630
        %v1799 = vpop.f32.mrb[0].mxu0
        %v1800 = vadd.f32 %v1671, %v1799
        %v1801 = vpop.f32.mrb[0].mxu0
        %1802 = vmatprep.mubr.f32.mxu0 0.0
        %1803 = vmatmul.mubr.f32.gmra.mrb[0].mxu0 %v1631
        %v1804 = vpop.f32.mrb[0].mxu0
        %v1805 = vadd.f32 %v1671, %v1804
        %v1806 = vpop.f32.mrb[0].mxu0
        %1807 = vmatprep.mubr.f32.mxu0 0.0
        %1808 = vmatmul.mubr.f32.gmra.mrb[0].mxu0 %v1632
        %v1809 = vpop.f32.mrb[0].mxu0
        %v1810 = vadd.f32 %v1671, %v1809
        %v1811 = vpop.f32.mrb[0].mxu0
        %1812 = vmatprep.mubr.f32.mxu0 0.0
        %1813 = vmatmul.mubr.f32.gmra.mrb[0].mxu0 %v1633
        %v1814 = vpop.f32.mrb[0].mxu0
        %v1815 = vadd.f32 %v1671, %v1814
        %v1816 = vpop.f32.mrb[0].mxu0
        %1817 = vmatprep.mubr.f32.mxu0 0.0
        %1818 = vmatmul.mubr.f32.gmra.mrb[0].mxu0 %v1634
        %v1819 = vpop.f32.mrb[0].mxu0
        %v1820 = vadd.f32 %v1671, %v1819
        %v1821 = vpop.f32.mrb[0].mxu0
        %1822 = vmatprep.mubr.f32.mxu0 0.0
        %1823 = vmatmul.mubr.f32.gmra.mrb[0].mxu0 %v1635
        %v1824 = vpop.f32.mrb[0].mxu0
        %v1825 = vadd.f32 %v1671, %v1824
        %v1826 = vpop.f32.mrb[0].mxu0
        %1827 = vmatprep.mubr.f32.mxu0 0.0
        %1828 = vmatmul.mubr.f32.gmra.mrb[0].mxu0 %v1636
        %v1829 = vpop.f32.mrb[0].mxu0
        %v1830 = vadd.f32 %v1671, %v1829
        %v1831 = vpop.f32.mrb[0].mxu0
        %1832 = vmatprep.mubr.f32.mxu0 0.0
        %1833 = vmatmul.mubr.f32.gmra.mrb[0].mxu0 %v1637
        %v1834 = vpop.f32.mrb[0].mxu0
        %v1835 = vadd.f32 %v1671, %v1834
        %v1836 = vpop.f32.mrb[0].mxu0
        %1837 = vmatprep.mubr.f32.mxu0 0.0
        %1838 = vmatmul.mubr.f32.gmra.mrb[0].mxu0 %v1638
        %v1839 = vpop.f32.mrb[0].mxu0
        %v1840 = vadd.f32 %v1671, %v1839
        %v1841 = vpop.f32.mrb[0].mxu0
        %1842 = vmatprep.mubr.f32.mxu0 0.0
        %1843 = vmatmul.mubr.f32.gmra.mrb[0].mxu0 %v1639
        %v1844 = vpop.f32.mrb[0].mxu0
        %v1845 = vadd.f32 %v1671, %v1844
        %v1846 = vpop.f32.mrb[0].mxu0
        %1847 = vmatprep.mubr.f32.mxu0 0.0
        %1848 = vmatmul.mubr.f32.gmra.mrb[0].mxu0 %v1640
        %v1849 = vpop.f32.mrb[0].mxu0
        %v1850 = vadd.f32 %v1671, %v1849
        %v1851 = vpop.f32.mrb[0].mxu0
        %1852 = vmatprep.mubr.f32.mxu0 0.0
        %1853 = vmatmul.mubr.f32.gmra.mrb[0].mxu0 %v1641
        %v1854 = vpop.f32.mrb[0].mxu0
        %v1855 = vadd.f32 %v1671, %v1854
        %v1856 = vpop.f32.mrb[0].mxu0
        %1857 = vmatprep.mubr.f32.mxu0 0.0
        %1858 = vmatmul.mubr.f32.gmra.mrb[0].mxu0 %v1642
        %v1859 = vpop.f32.mrb[0].mxu0
        %v1860 = vadd.f32 %v1671, %v1859
        %v1861 = vpop.f32.mrb[0].mxu0
        %1862 = vmatprep.mubr.f32.mxu0 0.0
        %1863 = vmatmul.mubr.f32.gmra.mrb[0].mxu0 %v1643
        %v1864 = vpop.f32.mrb[0].mxu0
        %v1865 = vadd.f32 %v1671, %v1864
        %v1866 = vpop.f32.mrb[0].mxu0
        %1867 = vmatprep.mubr.f32.mxu0 0.0
        %1868 = vmatmul.mubr.f32.gmra.mrb[0].mxu0 %v1644
        %v1869 = vpop.f32.mrb[0].mxu0
        %v1870 = vadd.f32 %v1671, %v1869
        %v1871 = vpop.f32.mrb[0].mxu0
        %1872 = vmatprep.mubr.f32.mxu0 0.0
        %1873 = vmatmul.mubr.f32.gmra.mrb[0].mxu0 %v1645
        %v1874 = vpop.f32.mrb[0].mxu0
        %v1875 = vadd.f32 %v1671, %v1874
        %v1876 = vpop.f32.mrb[0].mxu0
        %1877 = vmatprep.mubr.f32.mxu0 0.0
        %1878 = vmatmul.mubr.f32.gmra.mrb[0].mxu0 %v1646
        %v1879 = vpop.f32.mrb[0].mxu0
        %v1880 = vadd.f32 %v1671, %v1879
        %v1881 = vpop.f32.mrb[0].mxu0
        %1882 = vmatprep.mubr.f32.mxu0 0.0
        %1883 = vmatmul.mubr.f32.gmra.mrb[0].mxu0 %v1647
        %v1884 = vpop.f32.mrb[0].mxu0
        %v1885 = vadd.f32 %v1671, %v1884
        %v1886 = vpop.f32.mrb[0].mxu0
        %1887 = vmatprep.mubr.f32.mxu0 0.0
        %1888 = vmatmul.mubr.f32.gmra.mrb[0].mxu0 %v1648
        %v1889 = vpop.f32.mrb[0].mxu0
        %v1890 = vadd.f32 %v1671, %v1889
        %v1891 = vpop.f32.mrb[0].mxu0
        %1892 = vmatprep.mubr.f32.mxu0 0.0
        %1893 = vmatmul.mubr.f32.gmra.mrb[0].mxu0 %v1649
        %v1894 = vpop.f32.mrb[0].mxu0
        %v1895 = vadd.f32 %v1671, %v1894
        %v1896 = vpop.f32.mrb[0].mxu0
        %1897 = vdwg.mxu0
        %1898 = vst [vmem:[%s340] sm:$0xff] %v1740
        %1899 = vst [vmem:[%s340 + $0x8] sm:$0xff] %v1745
        %1900 = vst [vmem:[%s340 + $0x10] sm:$0xff] %v1750
        %1901 = vst [vmem:[%s340 + $0x18] sm:$0xff] %v1755
        %1902 = vst [vmem:[%s340 + $0x20] sm:$0xff] %v1760
        %1903 = vst [vmem:[%s340 + $0x28] sm:$0xff] %v1765
        %1904 = vst [vmem:[%s340 + $0x30] sm:$0xff] %v1770
        %1905 = vst [vmem:[%s340 + $0x38] sm:$0xff] %v1775
        %1906 = vst [vmem:[%s340 + $0x40] sm:$0xff] %v1780
        %1907 = vst [vmem:[%s340 + $0x48] sm:$0xff] %v1785
        %1908 = vst [vmem:[%s340 + $0x50] sm:$0xff] %v1790
        %1909 = vst [vmem:[%s340 + $0x58] sm:$0xff] %v1795
        %1910 = vst [vmem:[%s340 + $0x60] sm:$0xff] %v1800
        %1911 = vst [vmem:[%s340 + $0x68] sm:$0xff] %v1805
        %1912 = vst [vmem:[%s340 + $0x70] sm:$0xff] %v1810
        %1913 = vst [vmem:[%s340 + $0x78] sm:$0xff] %v1815
        %1914 = vst [vmem:[%s340 + $0x80] sm:$0xff] %v1820
        %1915 = vst [vmem:[%s340 + $0x88] sm:$0xff] %v1825
        %1916 = vst [vmem:[%s340 + $0x90] sm:$0xff] %v1830
        %1917 = vst [vmem:[%s340 + $0x98] sm:$0xff] %v1835
        %1918 = vst [vmem:[%s340 + $0xa0] sm:$0xff] %v1840
        %1919 = vst [vmem:[%s340 + $0xa8] sm:$0xff] %v1845
        %1920 = vst [vmem:[%s340 + $0xb0] sm:$0xff] %v1850
        %1921 = vst [vmem:[%s340 + $0xb8] sm:$0xff] %v1855
        %1922 = vst [vmem:[%s340 + $0xc0] sm:$0xff] %v1860
        %1923 = vst [vmem:[%s340 + $0xc8] sm:$0xff] %v1865
        %1924 = vst [vmem:[%s340 + $0xd0] sm:$0xff] %v1870
        %1925 = vst [vmem:[%s340 + $0xd8] sm:$0xff] %v1875
        %1926 = vst [vmem:[%s340 + $0xe0] sm:$0xff] %v1880
        %1927 = vst [vmem:[%s340 + $0xe8] sm:$0xff] %v1885
        %1928 = vst [vmem:[%s340 + $0xf0] sm:$0xff] %v1890
        %1929 = vst [vmem:[%s340 + $0xf8] sm:$0xff] %v1895
        %s1930 = sand.u32 %s186, 1
        %s1931 = scalar_lea.sflag [#allocation5], %s1930
        %s1932 = sand.u32 %s186, 1
        %s1933 = smul.addr %s1932, 256
        %s1934 = scalar_lea.vmem [#allocation11], %s1933
        // Predicated region
        $region65: #{tpu_custom_call.1} parent=47 // pred_check
          %p1935 = pneg %p196
        $region66: #{tpu_custom_call.1} parent=47 // pred_check_branch
          %1937 = sbr.rel (%p1935) target = $region68
        $region67: #{tpu_custom_call.1} parent=47 // pred_region
          %s1939 = ssub.s32 4096, 4096
          %1940 = vsyncadd %s1931, %s1939
          %s1941 = smul.addr %s26, 32
          %s1942 = smul.addr %s1941, 128
          %s1943 = scalar_lea.hbm %s7, %s1942
          %s1944 = sshll.u32 %s1934, 4
          %s1945 = int_to_ptr.vmem [resolvable:$true] %s1944
          %1950 = dma.vmem_to_hbm [thread:$0]  %s1945, 4096, %s1943, %s1931, 128, 128, 8
        $region68: #{tpu_custom_call.1} parent=47 // pred_fallthru
          _
      $region48: #{tpu_custom_call.1} parent=5 // pred_fallthru
        _
      %p1951 = scmp.le.s32.totalorder 2, %s21
      // Predicated region
      $region69: #{tpu_custom_call.1} parent=5 // pred_check
        %p1952 = pneg %p1951
      $region70: #{tpu_custom_call.1} parent=5 // pred_check_branch
        %1954 = sbr.rel (%p1952) target = $region72
      $region71: #{tpu_custom_call.1} parent=5 // pred_region
        %s1955 = ssub.s32 %s21, 2
        // Predicated region
        $region73: #{tpu_custom_call.1} parent=71 // pred_check
          %p1956 = pneg %p202
        $region74: #{tpu_custom_call.1} parent=71 // pred_check_branch
          %1958 = sbr.rel (%p1956) target = $region76
        $region75: #{tpu_custom_call.1} parent=71 // pred_region
          %s1959 = sand.u32 %s187, 1
          %s1960 = scalar_lea.sflag [#allocation5], %s1959
          %s1961 = sand.u32 %s187, 1
          %s1962 = smul.addr %s1961, 256
          %s1963 = scalar_lea.vmem [#allocation11], %s1962
          %1964 = dma.done %s1960, 4096
        $region76: #{tpu_custom_call.1} parent=71 // pred_fallthru
          _
      $region72: #{tpu_custom_call.1} parent=5 // pred_fallthru
        _
    $region6: #{tpu_custom_call.1} parent=1 // loop_footer
      %s25 = sadd.s32 1, %s21
    $region7: #{tpu_custom_call.1} parent=1 // loop_footer_branch
      %20 = sbr.rel target = $region3
    $region8: #{tpu_custom_call.1} parent=1 // loop_exit
      _
    %1965 = vsyncpa [#allocation4], 1
    %s1966 = scalar_lea.sflag [#allocation4], 1
    %1967 = vsyncpa %s1966, 1
    %1968 = vsyncpa [#allocation7], 1
    %1969 = vsyncpa [#allocation10], 1
    %1970 = vsyncpa [#allocation5], 1
    %s1971 = scalar_lea.sflag [#allocation5], 1
    %1972 = vsyncpa %s1971, 1

</llo_original>
